<compile_context>
chip_gen: v5e
topology: v5e:2x2
jax: 0.10.0
libtpu: 0.0.40
codegen_flags: <defaults>
</compile_context>

<pallas_src>
import functools

import numpy as np
import jax
import jax.numpy as jnp
from jax import lax
from jax.experimental import pallas as pl
from jax.experimental.pallas import tpu as pltpu

config = {"noise": 4, "batch": 8}   # batch must make AvgPool1d emit exactly one window
LATENT_DIM = 8
KS = 5
BN_EPS = 1e-5
_CONV_LANES = 8                     # conv contraction dim padded to one sublane tile


def extractor_kernel(x_ref, p_ref, o_ref, xpad_ref, *, batch, latent, noise, ks):
    f32 = jnp.float32
    H = latent
    pad = ks // 2 + 1
    L_out = batch + 2 * pad - ks + 1
    pool_rows = batch - 1                 # conv rows covered by the single pool window
    R_CONV = 3 * H + 8                    # first row of the conv-tap block in the slab

    # ---- unpack the single packed parameter slab (static, sublane-aligned slices) ----
    whh0T = p_ref[0:H, :]                     # (H, 4H)   w_hh0^T
    whh1T = p_ref[H:2 * H, :]                 # (H, 4H)   w_hh1^T
    wih1T = p_ref[2 * H:3 * H, :]             # (H, 4H)   w_ih1^T
    wih0_row = p_ref[3 * H:3 * H + 1, :]      # (1, 4H)
    b0_row = p_ref[3 * H + 1:3 * H + 2, :]    # (1, 4H)   b_ih0 + b_hh0
    b1_row = p_ref[3 * H + 2:3 * H + 3, :]    # (1, 4H)   b_ih1 + b_hh1
    gamma = p_ref[3 * H + 3:3 * H + 4, 0:H]   # (1, H)
    beta = p_ref[3 * H + 4:3 * H + 5, 0:H]    # (1, H)

    x = x_ref[...]                            # (batch, noise)

    # ---- Conv1d (bias=False, padding=ks//2+1), computed transposed: (L_out, H) ----
    # in-kernel im2col: zero-padded VMEM scratch + ks static sublane-sliced matmuls
    xpad_ref[...] = jnp.zeros_like(xpad_ref)
    xpad_ref[pad:pad + batch, 0:noise] = x
    conv_t = jnp.zeros((L_out, H), f32)
    for k in range(ks):
        tap = p_ref[R_CONV + 8 * k:R_CONV + 8 * (k + 1), 0:H]   # (8, H); rows >= noise are 0
        conv_t = conv_t + jnp.dot(xpad_ref[k:k + L_out, :], tap,
                                  preferred_element_type=f32)

    # ---- BatchNorm1d (track_running_stats=False -> per-call stats, biased var) ----
    mean = jnp.mean(conv_t, axis=0, keepdims=True)
    var = jnp.mean((conv_t - mean) ** 2, axis=0, keepdims=True)
    bn = (conv_t - mean) * lax.rsqrt(var + BN_EPS) * gamma + beta

    # ---- Mish: x*tanh(softplus(x)) == x*e*(e+2)/(e*(e+2)+2), e=exp(x); 2 EUP pushes ----
    e = jnp.exp(jnp.minimum(bn, 20.0))        # clamp: for x>20 the ratio is 1 in f32
    t = e * (e + 2.0)
    act = bn * (t / (t + 2.0))

    # ---- AvgPool1d(kernel=batch, stride=batch, padding=1, count_include_pad=True) ----
    # single output window = (left zero pad + act rows 0..batch-2) / batch
    g_row = jnp.sum(act[0:pool_rows, :], axis=0, keepdims=True) * (1.0 / batch)  # (1, H)

    # row -> column (the one unavoidable transpose feeding the recurrence):
    # broadcast against an iota-generated identity + lane reduce (VPU + XLU only).
    eye = (lax.broadcasted_iota(jnp.int32, (H, H), 0)
           == lax.broadcasted_iota(jnp.int32, (H, H), 1)).astype(f32)
    g_col = jnp.sum(g_row * eye, axis=1, keepdims=True)                           # (H, 1)

    # hoisted layer-0 input term: row t == g[t]*w_ih0 + (b_ih0+b_hh0)  -> (H, 4H)
    inp0 = g_col * wih0_row + b0_row

    # fused gate nonlinearity: gates = [i | f | g | o] along lanes;
    # sigmoid(x) = 0.5*tanh(0.5*x)+0.5 on i/f/o lanes, plain tanh on g lanes.
    lane = lax.broadcasted_iota(jnp.int32, (1, 4 * H), 1)
    is_gate_g = (lane >= 2 * H) & (lane < 3 * H)
    g_scale = jnp.where(is_gate_g, 1.0, 0.5).astype(f32)
    g_shift = jnp.where(is_gate_g, 0.0, 0.5).astype(f32)

    # ---- 2-layer LSTM, input_size=1, hidden=H, seq_len=H, zero initial state ----
    zero_row = jnp.zeros((1, H), f32)
    h0, c0, h1, c1 = zero_row, zero_row, zero_row, zero_row

    for step in range(H):                     # fully unrolled; every slice is static
        # both recurrent matvecs issue back-to-back at the top of the step
        rec0 = jnp.dot(h0, whh0T, preferred_element_type=f32)     # (1, 4H)
        rec1 = jnp.dot(h1, whh1T, preferred_element_type=f32)     # (1, 4H) off serial path

        gates0 = inp0[step:step + 1, :] + rec0
        a0 = g_scale * jnp.tanh(g_scale * gates0) + g_shift       # [i|f|g|o] in one vreg
        c0 = a0[:, H:2 * H] * c0 + a0[:, 0:H] * a0[:, 2 * H:3 * H]
        h0 = a0[:, 3 * H:4 * H] * jnp.tanh(c0)

        gates1 = jnp.dot(h0, wih1T, preferred_element_type=f32) + rec1 + b1_row
        a1 = g_scale * jnp.tanh(g_scale * gates1) + g_shift
        c1 = a1[:, H:2 * H] * c1 + a1[:, 0:H] * a1[:, 2 * H:3 * H]
        h1 = a1[:, 3 * H:4 * H] * jnp.tanh(c1)

    # ---- fused epilogue: out = [x | h1 broadcast to every row]  -> (batch, noise+H) ----
    o_ref[:, 0:noise] = x
    o_ref[:, noise:noise + H] = jnp.broadcast_to(h1, (batch, H))


def make_raw_params(key, noise=config["noise"], latent=LATENT_DIM, ks=KS):
    """Deterministic parameter init mirroring the PyTorch module's __init__."""
    H = latent
    ks_ = jax.random.split(key, 9)
    bound = 1.0 / (H ** 0.5)

    def u(kk, shape):
        return jax.random.uniform(kk, shape, jnp.float32, -bound, bound)

    return dict(
        wconv=jax.random.normal(ks_[0], (H, noise, ks), jnp.float32) * 0.01,
        gamma=jnp.ones((H,), jnp.float32),   # BatchNorm affine defaults
        beta=jnp.zeros((H,), jnp.float32),
        w_ih0=u(ks_[1], (4 * H, 1)), w_hh0=u(ks_[2], (4 * H, H)),
        b_ih0=u(ks_[3], (4 * H,)),   b_hh0=u(ks_[4], (4 * H,)),
        w_ih1=u(ks_[5], (4 * H, H)), w_hh1=u(ks_[6], (4 * H, H)),
        b_ih1=u(ks_[7], (4 * H,)),   b_hh1=u(ks_[8], (4 * H,)),
    )


def pack_params(raw, latent=LATENT_DIM, noise=config["noise"], ks=KS):
    """Pack all parameters into ONE (3H+8+8*ks, 4H) f32 slab.

    Pure function of the weights -- call once per parameter set, off the inference path.
    """
    H = latent
    W = 4 * H
    assert noise <= _CONV_LANES

    def block(a, rows):
        out = jnp.zeros((rows, W), jnp.float32)
        return out.at[:a.shape[0], :a.shape[1]].set(a.astype(jnp.float32))

    vec = jnp.zeros((8, W), jnp.float32)
    vec = vec.at[0, :].set(raw["w_ih0"].reshape(-1))
    vec = vec.at[1, :].set(raw["b_ih0"] + raw["b_hh0"])
    vec = vec.at[2, :].set(raw["b_ih1"] + raw["b_hh1"])
    vec = vec.at[3, 0:H].set(raw["gamma"])
    vec = vec.at[4, 0:H].set(raw["beta"])

    blocks = [block(raw["w_hh0"].T, H),            # rows 0    : H
              block(raw["w_hh1"].T, H),            # rows H    : 2H
              block(raw["w_ih1"].T, H),            # rows 2H   : 3H
              vec]                                 # rows 3H   : 3H+8
    for k in range(ks):                            # rows 3H+8+8k : 3H+8+8(k+1)
        blocks.append(block(raw["wconv"][:, :, k].T, _CONV_LANES))
    return jnp.concatenate(blocks, axis=0)


def extractor_forward(x, param_slab, latent=LATENT_DIM, ks=KS):
    """Bare pallas_call wrapper: im2col, conv/BN/Mish/pool, the LSTM, and the final
    concat all run inside the kernel (no XLA glue ops around it)."""
    batch, noise = x.shape
    H = latent
    pad = ks // 2 + 1
    L_out = batch + 2 * pad - ks + 1
    # AvgPool1d(kernel=batch, stride=batch, padding=1) must emit exactly ONE window
    # covering [left zero pad, act rows 0..batch-2]; the kernel hard-codes this.
    assert (L_out + 2 - batch) // batch + 1 == 1 and 2 <= batch and batch - 1 <= L_out

    kernel = functools.partial(extractor_kernel, batch=batch, latent=H,
                               noise=noise, ks=ks)
    return pl.pallas_call(
        kernel,
        out_shape=jax.ShapeDtypeStruct((batch, noise + H), jnp.float32),
        in_specs=[pl.BlockSpec(memory_space=pltpu.MemorySpace.VMEM),
                  pl.BlockSpec(memory_space=pltpu.MemorySpace.VMEM)],
        out_specs=pl.BlockSpec(memory_space=pltpu.MemorySpace.VMEM),
        scratch_shapes=[pltpu.VMEM((batch + 2 * pad, _CONV_LANES), jnp.float32)],
    )(x.astype(jnp.float32), param_slab)


def reference_forward(x, raw, latent=LATENT_DIM, ks=KS):
    """Pure-JAX reference reproducing the PyTorch forward (for validation)."""
    batch, _ = x.shape
    H = latent
    pad = ks // 2 + 1
    L_out = batch + 2 * pad - ks + 1
    hp = jax.lax.Precision.HIGHEST

    def sig(v):
        return 1.0 / (1.0 + jnp.exp(-v))

    def mish(v):
        sp = jnp.maximum(v, 0.0) + jnp.log1p(jnp.exp(-jnp.abs(v)))
        return v * jnp.tanh(sp)

    xt = jnp.pad(x.T, ((0, 0), (pad, pad)))
    conv = jnp.zeros((H, L_out), jnp.float32)
    for k in range(ks):
        conv = conv + jnp.dot(raw["wconv"][:, :, k], xt[:, k:k + L_out], precision=hp)
    mean = conv.mean(axis=1, keepdims=True)
    var = ((conv - mean) ** 2).mean(axis=1, keepdims=True)
    bn = (conv - mean) / jnp.sqrt(var + BN_EPS) * raw["gamma"][:, None] + raw["beta"][:, None]
    act = mish(bn)
    g = act[:, 0:batch - 1].sum(axis=1) / batch                        # (H,)

    def cell(x_in, h, c, w_ih, w_hh, b_ih, b_hh):
        gates = jnp.dot(w_ih, x_in, precision=hp) + jnp.dot(w_hh, h, precision=hp) + b_ih + b_hh
        i = sig(gates[0:H]); f = sig(gates[H:2 * H])
        gg = jnp.tanh(gates[2 * H:3 * H]); o = sig(gates[3 * H:4 * H])
        c = f * c + i * gg
        return o * jnp.tanh(c), c

    h0 = c0 = h1 = c1 = jnp.zeros((H,), jnp.float32)
    for t in range(H):
        h0, c0 = cell(g[t:t + 1], h0, c0, raw["w_ih0"], raw["w_hh0"], raw["b_ih0"], raw["b_hh0"])
        h1, c1 = cell(h0, h1, c1, raw["w_ih1"], raw["w_hh1"], raw["b_ih1"], raw["b_hh1"])
    return jnp.concatenate([x, jnp.tile(h1[None, :], (batch, 1))], axis=1)


if __name__ == "__main__":
    key = jax.random.PRNGKey(0)
    kx, kp = jax.random.split(key)
    x = jax.random.normal(kx, (config["batch"], config["noise"]), jnp.float32)
    raw = make_raw_params(kp)
    slab = pack_params(raw)   # hoisted off the per-call path (pure function of weights)

    out = extractor_forward(x, slab)
    out = jax.block_until_ready(out)
    assert out.shape == (config["batch"], config["noise"] + LATENT_DIM)

    ref = reference_forward(x, raw)
    np.testing.assert_allclose(np.asarray(out), np.asarray(ref), rtol=1e-3, atol=2e-4)
    print("KERNEL_OK")
</pallas_src>

<mosaic_0001>
module attributes {stable_mosaic.version = 11 : i64} {
  func.func @extractor_kernel(%arg0: memref<8x4xf32, #tpu.memory_space<vmem>>, %arg1: memref<72x32xf32, #tpu.memory_space<vmem>>, %arg2: memref<8x12xf32, #tpu.memory_space<vmem>>, %arg3: memref<14x8xf32, #tpu.memory_space<vmem>>) attributes {dimension_semantics = [], scalar_prefetch = 0 : i64, scratch_operands = 1 : i64, tpu.core_type = #tpu.core_type<tc>} {
    %c0 = arith.constant 0 : index
    %c0_0 = arith.constant 0 : index
    %0 = vector.load %arg1[%c0, %c0_0] : memref<72x32xf32, #tpu.memory_space<vmem>>, vector<8x32xf32>
    %c8 = arith.constant 8 : index
    %c0_1 = arith.constant 0 : index
    %1 = vector.load %arg1[%c8, %c0_1] : memref<72x32xf32, #tpu.memory_space<vmem>>, vector<8x32xf32>
    %c16 = arith.constant 16 : index
    %c0_2 = arith.constant 0 : index
    %2 = vector.load %arg1[%c16, %c0_2] : memref<72x32xf32, #tpu.memory_space<vmem>>, vector<8x32xf32>
    %c24 = arith.constant 24 : index
    %c0_3 = arith.constant 0 : index
    %3 = vector.load %arg1[%c24, %c0_3] : memref<72x32xf32, #tpu.memory_space<vmem>>, vector<1x32xf32>
    %c25 = arith.constant 25 : index
    %c0_4 = arith.constant 0 : index
    %4 = vector.load %arg1[%c25, %c0_4] : memref<72x32xf32, #tpu.memory_space<vmem>>, vector<1x32xf32>
    %c26 = arith.constant 26 : index
    %c0_5 = arith.constant 0 : index
    %5 = vector.load %arg1[%c26, %c0_5] : memref<72x32xf32, #tpu.memory_space<vmem>>, vector<1x32xf32>
    %c27 = arith.constant 27 : index
    %c0_6 = arith.constant 0 : index
    %6 = vector.load %arg1[%c27, %c0_6] : memref<72x32xf32, #tpu.memory_space<vmem>>, vector<1x8xf32>
    %c28 = arith.constant 28 : index
    %c0_7 = arith.constant 0 : index
    %7 = vector.load %arg1[%c28, %c0_7] : memref<72x32xf32, #tpu.memory_space<vmem>>, vector<1x8xf32>
    %c0_8 = arith.constant 0 : index
    %c0_9 = arith.constant 0 : index
    %8 = vector.load %arg0[%c0_8, %c0_9] : memref<8x4xf32, #tpu.memory_space<vmem>>, vector<8x4xf32>
    %cst = arith.constant 0.000000e+00 : f32
    %9 = vector.broadcast %cst : f32 to vector<14x8xf32>
    %c0_10 = arith.constant 0 : index
    %c0_11 = arith.constant 0 : index
    %10 = vector.load %arg3[%c0_10, %c0_11] : memref<14x8xf32, #tpu.memory_space<vmem>>, vector<14x8xf32>
    tpu.vector_store %arg3[%c0_10, %c0_11], %9 {strides = array<i32>} : memref<14x8xf32, #tpu.memory_space<vmem>>, vector<14x8xf32>,
    %c3 = arith.constant 3 : index
    %c0_12 = arith.constant 0 : index
    %11 = vector.load %arg3[%c3, %c0_12] : memref<14x8xf32, #tpu.memory_space<vmem>>, vector<8x4xf32>
    tpu.vector_store %arg3[%c3, %c0_12], %8 {strides = array<i32>} : memref<14x8xf32, #tpu.memory_space<vmem>>, vector<8x4xf32>,
    %cst_13 = arith.constant 0.000000e+00 : f32
    %12 = vector.broadcast %cst_13 : f32 to vector<10x8xf32>
    %c32 = arith.constant 32 : index
    %c0_14 = arith.constant 0 : index
    %13 = vector.load %arg1[%c32, %c0_14] : memref<72x32xf32, #tpu.memory_space<vmem>>, vector<8x8xf32>
    %c0_15 = arith.constant 0 : index
    %c0_16 = arith.constant 0 : index
    %14 = vector.load %arg3[%c0_15, %c0_16] : memref<14x8xf32, #tpu.memory_space<vmem>>, vector<10x8xf32>
    %cst_17 = arith.constant dense<0.000000e+00> : vector<10x8xf32>
    %15 = tpu.matmul %14, %13, %cst_17 {dimension_numbers = #tpu.dot_dimension_numbers<[1], [0], [0], [1], [0, 0, 1, 1], [], []>} : vector<10x8xf32>, vector<8x8xf32>, vector<10x8xf32> -> vector<10x8xf32>
    %16 = arith.addf %12, %15 : vector<10x8xf32>
    %c40 = arith.constant 40 : index
    %c0_18 = arith.constant 0 : index
    %17 = vector.load %arg1[%c40, %c0_18] : memref<72x32xf32, #tpu.memory_space<vmem>>, vector<8x8xf32>
    %c1 = arith.constant 1 : index
    %c0_19 = arith.constant 0 : index
    %18 = vector.load %arg3[%c1, %c0_19] : memref<14x8xf32, #tpu.memory_space<vmem>>, vector<10x8xf32>
    %cst_20 = arith.constant dense<0.000000e+00> : vector<10x8xf32>
    %19 = tpu.matmul %18, %17, %cst_20 {dimension_numbers = #tpu.dot_dimension_numbers<[1], [0], [0], [1], [0, 0, 1, 1], [], []>} : vector<10x8xf32>, vector<8x8xf32>, vector<10x8xf32> -> vector<10x8xf32>
    %20 = arith.addf %16, %19 : vector<10x8xf32>
    %c48 = arith.constant 48 : index
    %c0_21 = arith.constant 0 : index
    %21 = vector.load %arg1[%c48, %c0_21] : memref<72x32xf32, #tpu.memory_space<vmem>>, vector<8x8xf32>
    %c2 = arith.constant 2 : index
    %c0_22 = arith.constant 0 : index
    %22 = vector.load %arg3[%c2, %c0_22] : memref<14x8xf32, #tpu.memory_space<vmem>>, vector<10x8xf32>
    %cst_23 = arith.constant dense<0.000000e+00> : vector<10x8xf32>
    %23 = tpu.matmul %22, %21, %cst_23 {dimension_numbers = #tpu.dot_dimension_numbers<[1], [0], [0], [1], [0, 0, 1, 1], [], []>} : vector<10x8xf32>, vector<8x8xf32>, vector<10x8xf32> -> vector<10x8xf32>
    %24 = arith.addf %20, %23 : vector<10x8xf32>
    %c56 = arith.constant 56 : index
    %c0_24 = arith.constant 0 : index
    %25 = vector.load %arg1[%c56, %c0_24] : memref<72x32xf32, #tpu.memory_space<vmem>>, vector<8x8xf32>
    %c3_25 = arith.constant 3 : index
    %c0_26 = arith.constant 0 : index
    %26 = vector.load %arg3[%c3_25, %c0_26] : memref<14x8xf32, #tpu.memory_space<vmem>>, vector<10x8xf32>
    %cst_27 = arith.constant dense<0.000000e+00> : vector<10x8xf32>
    %27 = tpu.matmul %26, %25, %cst_27 {dimension_numbers = #tpu.dot_dimension_numbers<[1], [0], [0], [1], [0, 0, 1, 1], [], []>} : vector<10x8xf32>, vector<8x8xf32>, vector<10x8xf32> -> vector<10x8xf32>
    %28 = arith.addf %24, %27 : vector<10x8xf32>
    %c64 = arith.constant 64 : index
    %c0_28 = arith.constant 0 : index
    %29 = vector.load %arg1[%c64, %c0_28] : memref<72x32xf32, #tpu.memory_space<vmem>>, vector<8x8xf32>
    %c4 = arith.constant 4 : index
    %c0_29 = arith.constant 0 : index
    %30 = vector.load %arg3[%c4, %c0_29] : memref<14x8xf32, #tpu.memory_space<vmem>>, vector<10x8xf32>
    %cst_30 = arith.constant dense<0.000000e+00> : vector<10x8xf32>
    %31 = tpu.matmul %30, %29, %cst_30 {dimension_numbers = #tpu.dot_dimension_numbers<[1], [0], [0], [1], [0, 0, 1, 1], [], []>} : vector<10x8xf32>, vector<8x8xf32>, vector<10x8xf32> -> vector<10x8xf32>
    %32 = arith.addf %28, %31 : vector<10x8xf32>
    %cst_31 = arith.constant dense<0.000000e+00> : vector<8xf32>
    %33 = vector.multi_reduction <add>, %32, %cst_31 [0] : vector<10x8xf32> to vector<8xf32>
    %34 = vector.shape_cast %33 : vector<8xf32> to vector<1x8xf32>
    %cst_32 = arith.constant 1.000000e+01 : f32
    %35 = vector.broadcast %cst_32 : f32 to vector<1x8xf32>
    %36 = arith.divf %34, %35 : vector<1x8xf32>
    %37 = vector.broadcast %36 : vector<1x8xf32> to vector<10x8xf32>
    %38 = arith.subf %32, %37 : vector<10x8xf32>
    %39 = arith.mulf %38, %38 : vector<10x8xf32>
    %cst_33 = arith.constant dense<0.000000e+00> : vector<8xf32>
    %40 = vector.multi_reduction <add>, %39, %cst_33 [0] : vector<10x8xf32> to vector<8xf32>
    %41 = vector.shape_cast %40 : vector<8xf32> to vector<1x8xf32>
    %cst_34 = arith.constant 1.000000e+01 : f32
    %42 = vector.broadcast %cst_34 : f32 to vector<1x8xf32>
    %43 = arith.divf %41, %42 : vector<1x8xf32>
    %44 = vector.broadcast %36 : vector<1x8xf32> to vector<10x8xf32>
    %45 = arith.subf %32, %44 : vector<10x8xf32>
    %cst_35 = arith.constant 9.99999974E-6 : f32
    %46 = vector.broadcast %cst_35 : f32 to vector<1x8xf32>
    %47 = arith.addf %43, %46 : vector<1x8xf32>
    %48 = math.rsqrt %47 : vector<1x8xf32>
    %49 = vector.broadcast %48 : vector<1x8xf32> to vector<10x8xf32>
    %50 = arith.mulf %45, %49 : vector<10x8xf32>
    %51 = vector.broadcast %6 : vector<1x8xf32> to vector<10x8xf32>
    %52 = arith.mulf %50, %51 : vector<10x8xf32>
    %53 = vector.broadcast %7 : vector<1x8xf32> to vector<10x8xf32>
    %54 = arith.addf %52, %53 : vector<10x8xf32>
    %cst_36 = arith.constant 2.000000e+01 : f32
    %55 = vector.broadcast %cst_36 : f32 to vector<10x8xf32>
    %56 = arith.minimumf %54, %55 : vector<10x8xf32>
    %57 = math.exp %56 : vector<10x8xf32>
    %cst_37 = arith.constant 2.000000e+00 : f32
    %58 = vector.broadcast %cst_37 : f32 to vector<10x8xf32>
    %59 = arith.addf %57, %58 : vector<10x8xf32>
    %60 = arith.mulf %57, %59 : vector<10x8xf32>
    %cst_38 = arith.constant 2.000000e+00 : f32
    %61 = vector.broadcast %cst_38 : f32 to vector<10x8xf32>
    %62 = arith.addf %60, %61 : vector<10x8xf32>
    %63 = arith.divf %60, %62 : vector<10x8xf32>
    %64 = arith.mulf %54, %63 : vector<10x8xf32>
    %65 = vector.extract_strided_slice %64 {offsets = [0, 0], sizes = [7, 8], strides = [1, 1]} : vector<10x8xf32> to vector<7x8xf32>
    %cst_39 = arith.constant dense<0.000000e+00> : vector<8xf32>
    %66 = vector.multi_reduction <add>, %65, %cst_39 [0] : vector<7x8xf32> to vector<8xf32>
    %67 = vector.shape_cast %66 : vector<8xf32> to vector<1x8xf32>
    %cst_40 = arith.constant 1.250000e-01 : f32
    %68 = vector.broadcast %cst_40 : f32 to vector<1x8xf32>
    %69 = arith.mulf %67, %68 : vector<1x8xf32>
    %70 = tpu.iota {dimensions = array<i32: 0>} : vector<8x8xi32>
    %71 = tpu.iota {dimensions = array<i32: 1>} : vector<8x8xi32>
    %72 = arith.cmpi eq, %70, %71 : vector<8x8xi32>
    %73 = arith.extui %72 : vector<8x8xi1> to vector<8x8xi32>
    %74 = arith.sitofp %73 : vector<8x8xi32> to vector<8x8xf32>
    %75 = vector.broadcast %69 : vector<1x8xf32> to vector<8x8xf32>
    %76 = arith.mulf %75, %74 : vector<8x8xf32>
    %cst_41 = arith.constant dense<0.000000e+00> : vector<8xf32>
    %77 = vector.multi_reduction <add>, %76, %cst_41 [1] : vector<8x8xf32> to vector<8xf32>
    %78 = vector.shape_cast %77 : vector<8xf32> to vector<8x1xf32>
    %79 = vector.broadcast %78 : vector<8x1xf32> to vector<8x32xf32>
    %80 = vector.broadcast %3 : vector<1x32xf32> to vector<8x32xf32>
    %81 = arith.mulf %79, %80 : vector<8x32xf32>
    %82 = vector.broadcast %4 : vector<1x32xf32> to vector<8x32xf32>
    %83 = arith.addf %81, %82 : vector<8x32xf32>
    %84 = tpu.iota {dimensions = array<i32: 1>} : vector<1x32xi32>
    %c16_i32 = arith.constant 16 : i32
    %85 = vector.broadcast %c16_i32 : i32 to vector<1x32xi32>
    %86 = arith.cmpi sge, %84, %85 : vector<1x32xi32>
    %c24_i32 = arith.constant 24 : i32
    %87 = vector.broadcast %c24_i32 : i32 to vector<1x32xi32>
    %88 = arith.cmpi slt, %84, %87 : vector<1x32xi32>
    %89 = arith.andi %86, %88 : vector<1x32xi1>
    %cst_42 = arith.constant 1.000000e+00 : f32
    %cst_43 = arith.constant 5.000000e-01 : f32
    %90 = vector.broadcast %cst_42 : f32 to vector<1x32xf32>
    %91 = vector.broadcast %cst_43 : f32 to vector<1x32xf32>
    %92 = arith.select %89, %90, %91 : vector<1x32xi1>, vector<1x32xf32>
    %cst_44 = arith.constant 0.000000e+00 : f32
    %cst_45 = arith.constant 5.000000e-01 : f32
    %93 = vector.broadcast %cst_44 : f32 to vector<1x32xf32>
    %94 = vector.broadcast %cst_45 : f32 to vector<1x32xf32>
    %95 = arith.select %89, %93, %94 : vector<1x32xi1>, vector<1x32xf32>
    %cst_46 = arith.constant 0.000000e+00 : f32
    %96 = vector.broadcast %cst_46 : f32 to vector<1x8xf32>
    %cst_47 = arith.constant dense<0.000000e+00> : vector<1x32xf32>
    %97 = tpu.matmul %96, %0, %cst_47 {dimension_numbers = #tpu.dot_dimension_numbers<[1], [0], [0], [1], [0, 0, 1, 1], [], []>} : vector<1x8xf32>, vector<8x32xf32>, vector<1x32xf32> -> vector<1x32xf32>
    %cst_48 = arith.constant dense<0.000000e+00> : vector<1x32xf32>
    %98 = tpu.matmul %96, %1, %cst_48 {dimension_numbers = #tpu.dot_dimension_numbers<[1], [0], [0], [1], [0, 0, 1, 1], [], []>} : vector<1x8xf32>, vector<8x32xf32>, vector<1x32xf32> -> vector<1x32xf32>
    %99 = vector.extract_strided_slice %83 {offsets = [0, 0], sizes = [1, 32], strides = [1, 1]} : vector<8x32xf32> to vector<1x32xf32>
    %100 = arith.addf %99, %97 : vector<1x32xf32>
    %101 = arith.mulf %92, %100 : vector<1x32xf32>
    %102 = math.tanh %101 : vector<1x32xf32>
    %103 = arith.mulf %92, %102 : vector<1x32xf32>
    %104 = arith.addf %103, %95 : vector<1x32xf32>
    %105 = vector.extract_strided_slice %104 {offsets = [0, 8], sizes = [1, 8], strides = [1, 1]} : vector<1x32xf32> to vector<1x8xf32>
    %106 = arith.mulf %105, %96 : vector<1x8xf32>
    %107 = vector.extract_strided_slice %104 {offsets = [0, 0], sizes = [1, 8], strides = [1, 1]} : vector<1x32xf32> to vector<1x8xf32>
    %108 = vector.extract_strided_slice %104 {offsets = [0, 16], sizes = [1, 8], strides = [1, 1]} : vector<1x32xf32> to vector<1x8xf32>
    %109 = arith.mulf %107, %108 : vector<1x8xf32>
    %110 = arith.addf %106, %109 : vector<1x8xf32>
    %111 = vector.extract_strided_slice %104 {offsets = [0, 24], sizes = [1, 8], strides = [1, 1]} : vector<1x32xf32> to vector<1x8xf32>
    %112 = math.tanh %110 : vector<1x8xf32>
    %113 = arith.mulf %111, %112 : vector<1x8xf32>
    %cst_49 = arith.constant dense<0.000000e+00> : vector<1x32xf32>
    %114 = tpu.matmul %113, %2, %cst_49 {dimension_numbers = #tpu.dot_dimension_numbers<[1], [0], [0], [1], [0, 0, 1, 1], [], []>} : vector<1x8xf32>, vector<8x32xf32>, vector<1x32xf32> -> vector<1x32xf32>
    %115 = arith.addf %114, %98 : vector<1x32xf32>
    %116 = arith.addf %115, %5 : vector<1x32xf32>
    %117 = arith.mulf %92, %116 : vector<1x32xf32>
    %118 = math.tanh %117 : vector<1x32xf32>
    %119 = arith.mulf %92, %118 : vector<1x32xf32>
    %120 = arith.addf %119, %95 : vector<1x32xf32>
    %121 = vector.extract_strided_slice %120 {offsets = [0, 8], sizes = [1, 8], strides = [1, 1]} : vector<1x32xf32> to vector<1x8xf32>
    %122 = arith.mulf %121, %96 : vector<1x8xf32>
    %123 = vector.extract_strided_slice %120 {offsets = [0, 0], sizes = [1, 8], strides = [1, 1]} : vector<1x32xf32> to vector<1x8xf32>
    %124 = vector.extract_strided_slice %120 {offsets = [0, 16], sizes = [1, 8], strides = [1, 1]} : vector<1x32xf32> to vector<1x8xf32>
    %125 = arith.mulf %123, %124 : vector<1x8xf32>
    %126 = arith.addf %122, %125 : vector<1x8xf32>
    %127 = vector.extract_strided_slice %120 {offsets = [0, 24], sizes = [1, 8], strides = [1, 1]} : vector<1x32xf32> to vector<1x8xf32>
    %128 = math.tanh %126 : vector<1x8xf32>
    %129 = arith.mulf %127, %128 : vector<1x8xf32>
    %cst_50 = arith.constant dense<0.000000e+00> : vector<1x32xf32>
    %130 = tpu.matmul %113, %0, %cst_50 {dimension_numbers = #tpu.dot_dimension_numbers<[1], [0], [0], [1], [0, 0, 1, 1], [], []>} : vector<1x8xf32>, vector<8x32xf32>, vector<1x32xf32> -> vector<1x32xf32>
    %cst_51 = arith.constant dense<0.000000e+00> : vector<1x32xf32>
    %131 = tpu.matmul %129, %1, %cst_51 {dimension_numbers = #tpu.dot_dimension_numbers<[1], [0], [0], [1], [0, 0, 1, 1], [], []>} : vector<1x8xf32>, vector<8x32xf32>, vector<1x32xf32> -> vector<1x32xf32>
    %132 = vector.extract_strided_slice %83 {offsets = [1, 0], sizes = [1, 32], strides = [1, 1]} : vector<8x32xf32> to vector<1x32xf32>
    %133 = arith.addf %132, %130 : vector<1x32xf32>
    %134 = arith.mulf %92, %133 : vector<1x32xf32>
    %135 = math.tanh %134 : vector<1x32xf32>
    %136 = arith.mulf %92, %135 : vector<1x32xf32>
    %137 = arith.addf %136, %95 : vector<1x32xf32>
    %138 = vector.extract_strided_slice %137 {offsets = [0, 8], sizes = [1, 8], strides = [1, 1]} : vector<1x32xf32> to vector<1x8xf32>
    %139 = arith.mulf %138, %110 : vector<1x8xf32>
    %140 = vector.extract_strided_slice %137 {offsets = [0, 0], sizes = [1, 8], strides = [1, 1]} : vector<1x32xf32> to vector<1x8xf32>
    %141 = vector.extract_strided_slice %137 {offsets = [0, 16], sizes = [1, 8], strides = [1, 1]} : vector<1x32xf32> to vector<1x8xf32>
    %142 = arith.mulf %140, %141 : vector<1x8xf32>
    %143 = arith.addf %139, %142 : vector<1x8xf32>
    %144 = vector.extract_strided_slice %137 {offsets = [0, 24], sizes = [1, 8], strides = [1, 1]} : vector<1x32xf32> to vector<1x8xf32>
    %145 = math.tanh %143 : vector<1x8xf32>
    %146 = arith.mulf %144, %145 : vector<1x8xf32>
    %cst_52 = arith.constant dense<0.000000e+00> : vector<1x32xf32>
    %147 = tpu.matmul %146, %2, %cst_52 {dimension_numbers = #tpu.dot_dimension_numbers<[1], [0], [0], [1], [0, 0, 1, 1], [], []>} : vector<1x8xf32>, vector<8x32xf32>, vector<1x32xf32> -> vector<1x32xf32>
    %148 = arith.addf %147, %131 : vector<1x32xf32>
    %149 = arith.addf %148, %5 : vector<1x32xf32>
    %150 = arith.mulf %92, %149 : vector<1x32xf32>
    %151 = math.tanh %150 : vector<1x32xf32>
    %152 = arith.mulf %92, %151 : vector<1x32xf32>
    %153 = arith.addf %152, %95 : vector<1x32xf32>
    %154 = vector.extract_strided_slice %153 {offsets = [0, 8], sizes = [1, 8], strides = [1, 1]} : vector<1x32xf32> to vector<1x8xf32>
    %155 = arith.mulf %154, %126 : vector<1x8xf32>
    %156 = vector.extract_strided_slice %153 {offsets = [0, 0], sizes = [1, 8], strides = [1, 1]} : vector<1x32xf32> to vector<1x8xf32>
    %157 = vector.extract_strided_slice %153 {offsets = [0, 16], sizes = [1, 8], strides = [1, 1]} : vector<1x32xf32> to vector<1x8xf32>
    %158 = arith.mulf %156, %157 : vector<1x8xf32>
    %159 = arith.addf %155, %158 : vector<1x8xf32>
    %160 = vector.extract_strided_slice %153 {offsets = [0, 24], sizes = [1, 8], strides = [1, 1]} : vector<1x32xf32> to vector<1x8xf32>
    %161 = math.tanh %159 : vector<1x8xf32>
    %162 = arith.mulf %160, %161 : vector<1x8xf32>
    %cst_53 = arith.constant dense<0.000000e+00> : vector<1x32xf32>
    %163 = tpu.matmul %146, %0, %cst_53 {dimension_numbers = #tpu.dot_dimension_numbers<[1], [0], [0], [1], [0, 0, 1, 1], [], []>} : vector<1x8xf32>, vector<8x32xf32>, vector<1x32xf32> -> vector<1x32xf32>
    %cst_54 = arith.constant dense<0.000000e+00> : vector<1x32xf32>
    %164 = tpu.matmul %162, %1, %cst_54 {dimension_numbers = #tpu.dot_dimension_numbers<[1], [0], [0], [1], [0, 0, 1, 1], [], []>} : vector<1x8xf32>, vector<8x32xf32>, vector<1x32xf32> -> vector<1x32xf32>
    %165 = vector.extract_strided_slice %83 {offsets = [2, 0], sizes = [1, 32], strides = [1, 1]} : vector<8x32xf32> to vector<1x32xf32>
    %166 = arith.addf %165, %163 : vector<1x32xf32>
    %167 = arith.mulf %92, %166 : vector<1x32xf32>
    %168 = math.tanh %167 : vector<1x32xf32>
    %169 = arith.mulf %92, %168 : vector<1x32xf32>
    %170 = arith.addf %169, %95 : vector<1x32xf32>
    %171 = vector.extract_strided_slice %170 {offsets = [0, 8], sizes = [1, 8], strides = [1, 1]} : vector<1x32xf32> to vector<1x8xf32>
    %172 = arith.mulf %171, %143 : vector<1x8xf32>
    %173 = vector.extract_strided_slice %170 {offsets = [0, 0], sizes = [1, 8], strides = [1, 1]} : vector<1x32xf32> to vector<1x8xf32>
    %174 = vector.extract_strided_slice %170 {offsets = [0, 16], sizes = [1, 8], strides = [1, 1]} : vector<1x32xf32> to vector<1x8xf32>
    %175 = arith.mulf %173, %174 : vector<1x8xf32>
    %176 = arith.addf %172, %175 : vector<1x8xf32>
    %177 = vector.extract_strided_slice %170 {offsets = [0, 24], sizes = [1, 8], strides = [1, 1]} : vector<1x32xf32> to vector<1x8xf32>
    %178 = math.tanh %176 : vector<1x8xf32>
    %179 = arith.mulf %177, %178 : vector<1x8xf32>
    %cst_55 = arith.constant dense<0.000000e+00> : vector<1x32xf32>
    %180 = tpu.matmul %179, %2, %cst_55 {dimension_numbers = #tpu.dot_dimension_numbers<[1], [0], [0], [1], [0, 0, 1, 1], [], []>} : vector<1x8xf32>, vector<8x32xf32>, vector<1x32xf32> -> vector<1x32xf32>
    %181 = arith.addf %180, %164 : vector<1x32xf32>
    %182 = arith.addf %181, %5 : vector<1x32xf32>
    %183 = arith.mulf %92, %182 : vector<1x32xf32>
    %184 = math.tanh %183 : vector<1x32xf32>
    %185 = arith.mulf %92, %184 : vector<1x32xf32>
    %186 = arith.addf %185, %95 : vector<1x32xf32>
    %187 = vector.extract_strided_slice %186 {offsets = [0, 8], sizes = [1, 8], strides = [1, 1]} : vector<1x32xf32> to vector<1x8xf32>
    %188 = arith.mulf %187, %159 : vector<1x8xf32>
    %189 = vector.extract_strided_slice %186 {offsets = [0, 0], sizes = [1, 8], strides = [1, 1]} : vector<1x32xf32> to vector<1x8xf32>
    %190 = vector.extract_strided_slice %186 {offsets = [0, 16], sizes = [1, 8], strides = [1, 1]} : vector<1x32xf32> to vector<1x8xf32>
    %191 = arith.mulf %189, %190 : vector<1x8xf32>
    %192 = arith.addf %188, %191 : vector<1x8xf32>
    %193 = vector.extract_strided_slice %186 {offsets = [0, 24], sizes = [1, 8], strides = [1, 1]} : vector<1x32xf32> to vector<1x8xf32>
    %194 = math.tanh %192 : vector<1x8xf32>
    %195 = arith.mulf %193, %194 : vector<1x8xf32>
    %cst_56 = arith.constant dense<0.000000e+00> : vector<1x32xf32>
    %196 = tpu.matmul %179, %0, %cst_56 {dimension_numbers = #tpu.dot_dimension_numbers<[1], [0], [0], [1], [0, 0, 1, 1], [], []>} : vector<1x8xf32>, vector<8x32xf32>, vector<1x32xf32> -> vector<1x32xf32>
    %cst_57 = arith.constant dense<0.000000e+00> : vector<1x32xf32>
    %197 = tpu.matmul %195, %1, %cst_57 {dimension_numbers = #tpu.dot_dimension_numbers<[1], [0], [0], [1], [0, 0, 1, 1], [], []>} : vector<1x8xf32>, vector<8x32xf32>, vector<1x32xf32> -> vector<1x32xf32>
    %198 = vector.extract_strided_slice %83 {offsets = [3, 0], sizes = [1, 32], strides = [1, 1]} : vector<8x32xf32> to vector<1x32xf32>
    %199 = arith.addf %198, %196 : vector<1x32xf32>
    %200 = arith.mulf %92, %199 : vector<1x32xf32>
    %201 = math.tanh %200 : vector<1x32xf32>
    %202 = arith.mulf %92, %201 : vector<1x32xf32>
    %203 = arith.addf %202, %95 : vector<1x32xf32>
    %204 = vector.extract_strided_slice %203 {offsets = [0, 8], sizes = [1, 8], strides = [1, 1]} : vector<1x32xf32> to vector<1x8xf32>
    %205 = arith.mulf %204, %176 : vector<1x8xf32>
    %206 = vector.extract_strided_slice %203 {offsets = [0, 0], sizes = [1, 8], strides = [1, 1]} : vector<1x32xf32> to vector<1x8xf32>
    %207 = vector.extract_strided_slice %203 {offsets = [0, 16], sizes = [1, 8], strides = [1, 1]} : vector<1x32xf32> to vector<1x8xf32>
    %208 = arith.mulf %206, %207 : vector<1x8xf32>
    %209 = arith.addf %205, %208 : vector<1x8xf32>
    %210 = vector.extract_strided_slice %203 {offsets = [0, 24], sizes = [1, 8], strides = [1, 1]} : vector<1x32xf32> to vector<1x8xf32>
    %211 = math.tanh %209 : vector<1x8xf32>
    %212 = arith.mulf %210, %211 : vector<1x8xf32>
    %cst_58 = arith.constant dense<0.000000e+00> : vector<1x32xf32>
    %213 = tpu.matmul %212, %2, %cst_58 {dimension_numbers = #tpu.dot_dimension_numbers<[1], [0], [0], [1], [0, 0, 1, 1], [], []>} : vector<1x8xf32>, vector<8x32xf32>, vector<1x32xf32> -> vector<1x32xf32>
    %214 = arith.addf %213, %197 : vector<1x32xf32>
    %215 = arith.addf %214, %5 : vector<1x32xf32>
    %216 = arith.mulf %92, %215 : vector<1x32xf32>
    %217 = math.tanh %216 : vector<1x32xf32>
    %218 = arith.mulf %92, %217 : vector<1x32xf32>
    %219 = arith.addf %218, %95 : vector<1x32xf32>
    %220 = vector.extract_strided_slice %219 {offsets = [0, 8], sizes = [1, 8], strides = [1, 1]} : vector<1x32xf32> to vector<1x8xf32>
    %221 = arith.mulf %220, %192 : vector<1x8xf32>
    %222 = vector.extract_strided_slice %219 {offsets = [0, 0], sizes = [1, 8], strides = [1, 1]} : vector<1x32xf32> to vector<1x8xf32>
    %223 = vector.extract_strided_slice %219 {offsets = [0, 16], sizes = [1, 8], strides = [1, 1]} : vector<1x32xf32> to vector<1x8xf32>
    %224 = arith.mulf %222, %223 : vector<1x8xf32>
    %225 = arith.addf %221, %224 : vector<1x8xf32>
    %226 = vector.extract_strided_slice %219 {offsets = [0, 24], sizes = [1, 8], strides = [1, 1]} : vector<1x32xf32> to vector<1x8xf32>
    %227 = math.tanh %225 : vector<1x8xf32>
    %228 = arith.mulf %226, %227 : vector<1x8xf32>
    %cst_59 = arith.constant dense<0.000000e+00> : vector<1x32xf32>
    %229 = tpu.matmul %212, %0, %cst_59 {dimension_numbers = #tpu.dot_dimension_numbers<[1], [0], [0], [1], [0, 0, 1, 1], [], []>} : vector<1x8xf32>, vector<8x32xf32>, vector<1x32xf32> -> vector<1x32xf32>
    %cst_60 = arith.constant dense<0.000000e+00> : vector<1x32xf32>
    %230 = tpu.matmul %228, %1, %cst_60 {dimension_numbers = #tpu.dot_dimension_numbers<[1], [0], [0], [1], [0, 0, 1, 1], [], []>} : vector<1x8xf32>, vector<8x32xf32>, vector<1x32xf32> -> vector<1x32xf32>
    %231 = vector.extract_strided_slice %83 {offsets = [4, 0], sizes = [1, 32], strides = [1, 1]} : vector<8x32xf32> to vector<1x32xf32>
    %232 = arith.addf %231, %229 : vector<1x32xf32>
    %233 = arith.mulf %92, %232 : vector<1x32xf32>
    %234 = math.tanh %233 : vector<1x32xf32>
    %235 = arith.mulf %92, %234 : vector<1x32xf32>
    %236 = arith.addf %235, %95 : vector<1x32xf32>
    %237 = vector.extract_strided_slice %236 {offsets = [0, 8], sizes = [1, 8], strides = [1, 1]} : vector<1x32xf32> to vector<1x8xf32>
    %238 = arith.mulf %237, %209 : vector<1x8xf32>
    %239 = vector.extract_strided_slice %236 {offsets = [0, 0], sizes = [1, 8], strides = [1, 1]} : vector<1x32xf32> to vector<1x8xf32>
    %240 = vector.extract_strided_slice %236 {offsets = [0, 16], sizes = [1, 8], strides = [1, 1]} : vector<1x32xf32> to vector<1x8xf32>
    %241 = arith.mulf %239, %240 : vector<1x8xf32>
    %242 = arith.addf %238, %241 : vector<1x8xf32>
    %243 = vector.extract_strided_slice %236 {offsets = [0, 24], sizes = [1, 8], strides = [1, 1]} : vector<1x32xf32> to vector<1x8xf32>
    %244 = math.tanh %242 : vector<1x8xf32>
    %245 = arith.mulf %243, %244 : vector<1x8xf32>
    %cst_61 = arith.constant dense<0.000000e+00> : vector<1x32xf32>
    %246 = tpu.matmul %245, %2, %cst_61 {dimension_numbers = #tpu.dot_dimension_numbers<[1], [0], [0], [1], [0, 0, 1, 1], [], []>} : vector<1x8xf32>, vector<8x32xf32>, vector<1x32xf32> -> vector<1x32xf32>
    %247 = arith.addf %246, %230 : vector<1x32xf32>
    %248 = arith.addf %247, %5 : vector<1x32xf32>
    %249 = arith.mulf %92, %248 : vector<1x32xf32>
    %250 = math.tanh %249 : vector<1x32xf32>
    %251 = arith.mulf %92, %250 : vector<1x32xf32>
    %252 = arith.addf %251, %95 : vector<1x32xf32>
    %253 = vector.extract_strided_slice %252 {offsets = [0, 8], sizes = [1, 8], strides = [1, 1]} : vector<1x32xf32> to vector<1x8xf32>
    %254 = arith.mulf %253, %225 : vector<1x8xf32>
    %255 = vector.extract_strided_slice %252 {offsets = [0, 0], sizes = [1, 8], strides = [1, 1]} : vector<1x32xf32> to vector<1x8xf32>
    %256 = vector.extract_strided_slice %252 {offsets = [0, 16], sizes = [1, 8], strides = [1, 1]} : vector<1x32xf32> to vector<1x8xf32>
    %257 = arith.mulf %255, %256 : vector<1x8xf32>
    %258 = arith.addf %254, %257 : vector<1x8xf32>
    %259 = vector.extract_strided_slice %252 {offsets = [0, 24], sizes = [1, 8], strides = [1, 1]} : vector<1x32xf32> to vector<1x8xf32>
    %260 = math.tanh %258 : vector<1x8xf32>
    %261 = arith.mulf %259, %260 : vector<1x8xf32>
    %cst_62 = arith.constant dense<0.000000e+00> : vector<1x32xf32>
    %262 = tpu.matmul %245, %0, %cst_62 {dimension_numbers = #tpu.dot_dimension_numbers<[1], [0], [0], [1], [0, 0, 1, 1], [], []>} : vector<1x8xf32>, vector<8x32xf32>, vector<1x32xf32> -> vector<1x32xf32>
    %cst_63 = arith.constant dense<0.000000e+00> : vector<1x32xf32>
    %263 = tpu.matmul %261, %1, %cst_63 {dimension_numbers = #tpu.dot_dimension_numbers<[1], [0], [0], [1], [0, 0, 1, 1], [], []>} : vector<1x8xf32>, vector<8x32xf32>, vector<1x32xf32> -> vector<1x32xf32>
    %264 = vector.extract_strided_slice %83 {offsets = [5, 0], sizes = [1, 32], strides = [1, 1]} : vector<8x32xf32> to vector<1x32xf32>
    %265 = arith.addf %264, %262 : vector<1x32xf32>
    %266 = arith.mulf %92, %265 : vector<1x32xf32>
    %267 = math.tanh %266 : vector<1x32xf32>
    %268 = arith.mulf %92, %267 : vector<1x32xf32>
    %269 = arith.addf %268, %95 : vector<1x32xf32>
    %270 = vector.extract_strided_slice %269 {offsets = [0, 8], sizes = [1, 8], strides = [1, 1]} : vector<1x32xf32> to vector<1x8xf32>
    %271 = arith.mulf %270, %242 : vector<1x8xf32>
    %272 = vector.extract_strided_slice %269 {offsets = [0, 0], sizes = [1, 8], strides = [1, 1]} : vector<1x32xf32> to vector<1x8xf32>
    %273 = vector.extract_strided_slice %269 {offsets = [0, 16], sizes = [1, 8], strides = [1, 1]} : vector<1x32xf32> to vector<1x8xf32>
    %274 = arith.mulf %272, %273 : vector<1x8xf32>
    %275 = arith.addf %271, %274 : vector<1x8xf32>
    %276 = vector.extract_strided_slice %269 {offsets = [0, 24], sizes = [1, 8], strides = [1, 1]} : vector<1x32xf32> to vector<1x8xf32>
    %277 = math.tanh %275 : vector<1x8xf32>
    %278 = arith.mulf %276, %277 : vector<1x8xf32>
    %cst_64 = arith.constant dense<0.000000e+00> : vector<1x32xf32>
    %279 = tpu.matmul %278, %2, %cst_64 {dimension_numbers = #tpu.dot_dimension_numbers<[1], [0], [0], [1], [0, 0, 1, 1], [], []>} : vector<1x8xf32>, vector<8x32xf32>, vector<1x32xf32> -> vector<1x32xf32>
    %280 = arith.addf %279, %263 : vector<1x32xf32>
    %281 = arith.addf %280, %5 : vector<1x32xf32>
    %282 = arith.mulf %92, %281 : vector<1x32xf32>
    %283 = math.tanh %282 : vector<1x32xf32>
    %284 = arith.mulf %92, %283 : vector<1x32xf32>
    %285 = arith.addf %284, %95 : vector<1x32xf32>
    %286 = vector.extract_strided_slice %285 {offsets = [0, 8], sizes = [1, 8], strides = [1, 1]} : vector<1x32xf32> to vector<1x8xf32>
    %287 = arith.mulf %286, %258 : vector<1x8xf32>
    %288 = vector.extract_strided_slice %285 {offsets = [0, 0], sizes = [1, 8], strides = [1, 1]} : vector<1x32xf32> to vector<1x8xf32>
    %289 = vector.extract_strided_slice %285 {offsets = [0, 16], sizes = [1, 8], strides = [1, 1]} : vector<1x32xf32> to vector<1x8xf32>
    %290 = arith.mulf %288, %289 : vector<1x8xf32>
    %291 = arith.addf %287, %290 : vector<1x8xf32>
    %292 = vector.extract_strided_slice %285 {offsets = [0, 24], sizes = [1, 8], strides = [1, 1]} : vector<1x32xf32> to vector<1x8xf32>
    %293 = math.tanh %291 : vector<1x8xf32>
    %294 = arith.mulf %292, %293 : vector<1x8xf32>
    %cst_65 = arith.constant dense<0.000000e+00> : vector<1x32xf32>
    %295 = tpu.matmul %278, %0, %cst_65 {dimension_numbers = #tpu.dot_dimension_numbers<[1], [0], [0], [1], [0, 0, 1, 1], [], []>} : vector<1x8xf32>, vector<8x32xf32>, vector<1x32xf32> -> vector<1x32xf32>
    %cst_66 = arith.constant dense<0.000000e+00> : vector<1x32xf32>
    %296 = tpu.matmul %294, %1, %cst_66 {dimension_numbers = #tpu.dot_dimension_numbers<[1], [0], [0], [1], [0, 0, 1, 1], [], []>} : vector<1x8xf32>, vector<8x32xf32>, vector<1x32xf32> -> vector<1x32xf32>
    %297 = vector.extract_strided_slice %83 {offsets = [6, 0], sizes = [1, 32], strides = [1, 1]} : vector<8x32xf32> to vector<1x32xf32>
    %298 = arith.addf %297, %295 : vector<1x32xf32>
    %299 = arith.mulf %92, %298 : vector<1x32xf32>
    %300 = math.tanh %299 : vector<1x32xf32>
    %301 = arith.mulf %92, %300 : vector<1x32xf32>
    %302 = arith.addf %301, %95 : vector<1x32xf32>
    %303 = vector.extract_strided_slice %302 {offsets = [0, 8], sizes = [1, 8], strides = [1, 1]} : vector<1x32xf32> to vector<1x8xf32>
    %304 = arith.mulf %303, %275 : vector<1x8xf32>
    %305 = vector.extract_strided_slice %302 {offsets = [0, 0], sizes = [1, 8], strides = [1, 1]} : vector<1x32xf32> to vector<1x8xf32>
    %306 = vector.extract_strided_slice %302 {offsets = [0, 16], sizes = [1, 8], strides = [1, 1]} : vector<1x32xf32> to vector<1x8xf32>
    %307 = arith.mulf %305, %306 : vector<1x8xf32>
    %308 = arith.addf %304, %307 : vector<1x8xf32>
    %309 = vector.extract_strided_slice %302 {offsets = [0, 24], sizes = [1, 8], strides = [1, 1]} : vector<1x32xf32> to vector<1x8xf32>
    %310 = math.tanh %308 : vector<1x8xf32>
    %311 = arith.mulf %309, %310 : vector<1x8xf32>
    %cst_67 = arith.constant dense<0.000000e+00> : vector<1x32xf32>
    %312 = tpu.matmul %311, %2, %cst_67 {dimension_numbers = #tpu.dot_dimension_numbers<[1], [0], [0], [1], [0, 0, 1, 1], [], []>} : vector<1x8xf32>, vector<8x32xf32>, vector<1x32xf32> -> vector<1x32xf32>
    %313 = arith.addf %312, %296 : vector<1x32xf32>
    %314 = arith.addf %313, %5 : vector<1x32xf32>
    %315 = arith.mulf %92, %314 : vector<1x32xf32>
    %316 = math.tanh %315 : vector<1x32xf32>
    %317 = arith.mulf %92, %316 : vector<1x32xf32>
    %318 = arith.addf %317, %95 : vector<1x32xf32>
    %319 = vector.extract_strided_slice %318 {offsets = [0, 8], sizes = [1, 8], strides = [1, 1]} : vector<1x32xf32> to vector<1x8xf32>
    %320 = arith.mulf %319, %291 : vector<1x8xf32>
    %321 = vector.extract_strided_slice %318 {offsets = [0, 0], sizes = [1, 8], strides = [1, 1]} : vector<1x32xf32> to vector<1x8xf32>
    %322 = vector.extract_strided_slice %318 {offsets = [0, 16], sizes = [1, 8], strides = [1, 1]} : vector<1x32xf32> to vector<1x8xf32>
    %323 = arith.mulf %321, %322 : vector<1x8xf32>
    %324 = arith.addf %320, %323 : vector<1x8xf32>
    %325 = vector.extract_strided_slice %318 {offsets = [0, 24], sizes = [1, 8], strides = [1, 1]} : vector<1x32xf32> to vector<1x8xf32>
    %326 = math.tanh %324 : vector<1x8xf32>
    %327 = arith.mulf %325, %326 : vector<1x8xf32>
    %cst_68 = arith.constant dense<0.000000e+00> : vector<1x32xf32>
    %328 = tpu.matmul %311, %0, %cst_68 {dimension_numbers = #tpu.dot_dimension_numbers<[1], [0], [0], [1], [0, 0, 1, 1], [], []>} : vector<1x8xf32>, vector<8x32xf32>, vector<1x32xf32> -> vector<1x32xf32>
    %cst_69 = arith.constant dense<0.000000e+00> : vector<1x32xf32>
    %329 = tpu.matmul %327, %1, %cst_69 {dimension_numbers = #tpu.dot_dimension_numbers<[1], [0], [0], [1], [0, 0, 1, 1], [], []>} : vector<1x8xf32>, vector<8x32xf32>, vector<1x32xf32> -> vector<1x32xf32>
    %330 = vector.extract_strided_slice %83 {offsets = [7, 0], sizes = [1, 32], strides = [1, 1]} : vector<8x32xf32> to vector<1x32xf32>
    %331 = arith.addf %330, %328 : vector<1x32xf32>
    %332 = arith.mulf %92, %331 : vector<1x32xf32>
    %333 = math.tanh %332 : vector<1x32xf32>
    %334 = arith.mulf %92, %333 : vector<1x32xf32>
    %335 = arith.addf %334, %95 : vector<1x32xf32>
    %336 = vector.extract_strided_slice %335 {offsets = [0, 8], sizes = [1, 8], strides = [1, 1]} : vector<1x32xf32> to vector<1x8xf32>
    %337 = arith.mulf %336, %308 : vector<1x8xf32>
    %338 = vector.extract_strided_slice %335 {offsets = [0, 0], sizes = [1, 8], strides = [1, 1]} : vector<1x32xf32> to vector<1x8xf32>
    %339 = vector.extract_strided_slice %335 {offsets = [0, 16], sizes = [1, 8], strides = [1, 1]} : vector<1x32xf32> to vector<1x8xf32>
    %340 = arith.mulf %338, %339 : vector<1x8xf32>
    %341 = arith.addf %337, %340 : vector<1x8xf32>
    %342 = vector.extract_strided_slice %335 {offsets = [0, 24], sizes = [1, 8], strides = [1, 1]} : vector<1x32xf32> to vector<1x8xf32>
    %343 = math.tanh %341 : vector<1x8xf32>
    %344 = arith.mulf %342, %343 : vector<1x8xf32>
    %cst_70 = arith.constant dense<0.000000e+00> : vector<1x32xf32>
    %345 = tpu.matmul %344, %2, %cst_70 {dimension_numbers = #tpu.dot_dimension_numbers<[1], [0], [0], [1], [0, 0, 1, 1], [], []>} : vector<1x8xf32>, vector<8x32xf32>, vector<1x32xf32> -> vector<1x32xf32>
    %346 = arith.addf %345, %329 : vector<1x32xf32>
    %347 = arith.addf %346, %5 : vector<1x32xf32>
    %348 = arith.mulf %92, %347 : vector<1x32xf32>
    %349 = math.tanh %348 : vector<1x32xf32>
    %350 = arith.mulf %92, %349 : vector<1x32xf32>
    %351 = arith.addf %350, %95 : vector<1x32xf32>
    %352 = vector.extract_strided_slice %351 {offsets = [0, 8], sizes = [1, 8], strides = [1, 1]} : vector<1x32xf32> to vector<1x8xf32>
    %353 = arith.mulf %352, %324 : vector<1x8xf32>
    %354 = vector.extract_strided_slice %351 {offsets = [0, 0], sizes = [1, 8], strides = [1, 1]} : vector<1x32xf32> to vector<1x8xf32>
    %355 = vector.extract_strided_slice %351 {offsets = [0, 16], sizes = [1, 8], strides = [1, 1]} : vector<1x32xf32> to vector<1x8xf32>
    %356 = arith.mulf %354, %355 : vector<1x8xf32>
    %357 = arith.addf %353, %356 : vector<1x8xf32>
    %358 = vector.extract_strided_slice %351 {offsets = [0, 24], sizes = [1, 8], strides = [1, 1]} : vector<1x32xf32> to vector<1x8xf32>
    %359 = math.tanh %357 : vector<1x8xf32>
    %360 = arith.mulf %358, %359 : vector<1x8xf32>
    %c0_71 = arith.constant 0 : index
    %c0_72 = arith.constant 0 : index
    %361 = vector.load %arg2[%c0_71, %c0_72] : memref<8x12xf32, #tpu.memory_space<vmem>>, vector<8x4xf32>
    tpu.vector_store %arg2[%c0_71, %c0_72], %8 {strides = array<i32>} : memref<8x12xf32, #tpu.memory_space<vmem>>, vector<8x4xf32>,
    %362 = vector.shape_cast %360 : vector<1x8xf32> to vector<1x8xf32>
    %363 = vector.broadcast %362 : vector<1x8xf32> to vector<8x8xf32>
    %c0_73 = arith.constant 0 : index
    %c4_74 = arith.constant 4 : index
    %364 = vector.load %arg2[%c0_73, %c4_74] : memref<8x12xf32, #tpu.memory_space<vmem>>, vector<8x8xf32>
    tpu.vector_store %arg2[%c0_73, %c4_74], %363 {strides = array<i32>} : memref<8x12xf32, #tpu.memory_space<vmem>>, vector<8x8xf32>,
    return
  }
}

</mosaic_0001>

<llo_original>
// kernel: tpu_custom_call.1
$region0: #{tpu_custom_call.1}
  #allocation0 [shape = 'u32[]', space=smem, size = 0x4, offset = 0x4, fixed_abs, tag = 'smem constant byte address 0x4 - core index']
  #allocation1 [shape = 'u32[72,128]{1,0:T(1,128)}', space=vmem, size = 0x9000, scoped, tag = 'internal scratch']
  #allocation2 [shape = 'f32[14,8]{1,0:T(8,128)}', space=vmem, size = 0x2000, scoped, tag = 'scratch operand']
  %s0 = inlined_call_operand.vmem [shape: f32[8,4], index: 0, kind: input, shape index: {}]
  %s1 = inlined_call_operand.vmem [shape: f32[72,32], index: 1, kind: input, shape index: {}]
  %s2 = inlined_call_operand.hbm [shape: f32[8,12], index: 2, kind: output, shape index: {}]
  %s3 = sld [smem:[#allocation0]]
  $region18: #{tpu_custom_call.1} parent=0
    _
  %s5 = ssub.s32 1, %s3
  %s6 = scalar_select 0, %s5, %s3
  $region1: #{tpu_custom_call.1} parent=0
    #allocation3 [shape = 'u8[4096]{0}', space=vmem, size = 0x1000, scoped, tag = 'output window, operand 0, single buffered']
    #allocation4 [shape = 's32[1]{0}', space=sflag, size = 0x4, scoped, tag = 'scoped memory for tpu_custom_call.1']
    %7 = vsyncpa [#allocation4], 0
    // Predicated region
    $region2: #{tpu_custom_call.1} parent=1 // pred_check
      _
    $region3: #{tpu_custom_call.1} parent=1 // pred_check_branch
      %9 = sbr.rel (0) target = $region5
    $region4: #{tpu_custom_call.1} parent=1 // pred_region
      _
    $region5: #{tpu_custom_call.1} parent=1 // pred_fallthru
      _
    // Predicated region
    $region6: #{tpu_custom_call.1} parent=1 // pred_check
      _
    $region7: #{tpu_custom_call.1} parent=1 // pred_check_branch
      %11 = sbr.rel (0) target = $region9
    $region8: #{tpu_custom_call.1} parent=1 // pred_region
      _
    $region9: #{tpu_custom_call.1} parent=1 // pred_fallthru
      _
    %v12 = vld [vmem:[%s1] sm:$0xff]
    %v13 = vld [vmem:[%s1 + $0x8] sm:$0xff]
    %v14 = vld [vmem:[%s1 + $0x10] sm:$0xff]
    %v15 = vld [vmem:[%s1 + $0x18] sm:$0x1]
    %v16 = vld [vmem:[%s1 + $0x19] sm:$0x1]
    %v17 = vld [vmem:[%s1 + $0x1a] sm:$0x1]
    %v18 = vld [vmem:[%s1 + $0x1b] sm:$0x1]
    %v19 = vld [vmem:[%s1 + $0x1c] sm:$0x1]
    %v20 = vld [vmem:[%s0] sm:$0xff]
    %vm21 = vcmask 64512
    %22 = vst.msk [vmem:[#allocation2] sm:$0xff] %vm21, 0.0
    %vm23 = vcmask 62464
    %24 = vst.msk [vmem:[#allocation2 + $0x8] sm:$0x3f] %vm23, 0.0
    %vm25 = vcmask 31744
    %26 = vst.msk [vmem:[#allocation2 + $0x3] sm:$0xff] %vm25, %v20
    %v27 = vld [vmem:[%s1 + $0x20] sm:$0xff]
    %v28 = vld [vmem:[#allocation2] sm:$0xff]
    %v29 = vld [vmem:[#allocation2 + $0x8] sm:$0x3]
    %v30 = vld [vmem:[%s1 + $0x28] sm:$0xff]
    %v31 = vld [vmem:[#allocation2 + $0x1] sm:$0xff]
    %v32 = vld [vmem:[#allocation2 + $0x9] sm:$0x3]
    %v34 = vsel %vm21, %v31, 0
    %v37 = vsel %vm21, %v32, 0
    %39 = vmatpush.msra.mxu0 0.0
    %40 = vmatpush.msra.mxu0 0.0
    %41 = vmatpush.msra.mxu0 0.0
    %42 = vmatpush.msra.mxu0 0.0
    %43 = vmatpush.msra.mxu0 0.0
    %44 = vmatpush.msra.mxu0 0.0
    %45 = vmatpush.msra.mxu0 0.0
    %46 = vmatpush.msra.mxu0 0.0
    %47 = vmatpush.msra.mxu0 0.0
    %48 = vmatpush.msra.mxu0 0.0
    %49 = vmatpush.msra.mxu0 0.0
    %50 = vmatpush.msra.mxu0 0.0
    %51 = vmatpush.msra.mxu0 0.0
    %52 = vmatpush.msra.mxu0 0.0
    %53 = vmatpush.msra.mxu0 0.0
    %54 = vmatpush.msra.mxu0 %v30
    %55 = vmatmul.f32.gmra.mxu0 %v34
    %v56 = vpop.f32.mrf.mxu0
    %v57 = vadd.f32 0.0, %v56
    %58 = vmatmul.f32.gmra.mxu0 %v37
    %v59 = vpop.f32.mrf.mxu0
    %v60 = vadd.f32 0.0, %v59
    %61 = vdwg.mxu0
    %v63 = vsel %vm21, %v28, 0
    %v66 = vsel %vm21, %v29, 0
    %68 = vmatpush.msra.mxu0 0.0
    %69 = vmatpush.msra.mxu0 0.0
    %70 = vmatpush.msra.mxu0 0.0
    %71 = vmatpush.msra.mxu0 0.0
    %72 = vmatpush.msra.mxu0 0.0
    %73 = vmatpush.msra.mxu0 0.0
    %74 = vmatpush.msra.mxu0 0.0
    %75 = vmatpush.msra.mxu0 0.0
    %76 = vmatpush.msra.mxu0 0.0
    %77 = vmatpush.msra.mxu0 0.0
    %78 = vmatpush.msra.mxu0 0.0
    %79 = vmatpush.msra.mxu0 0.0
    %80 = vmatpush.msra.mxu0 0.0
    %81 = vmatpush.msra.mxu0 0.0
    %82 = vmatpush.msra.mxu0 0.0
    %83 = vmatpush.msra.mxu0 %v27
    %84 = vmatmul.f32.gmra.mxu0 %v63
    %v85 = vpop.f32.mrf.mxu0
    %v86 = vadd.f32 %v57, %v85
    %87 = vmatmul.f32.gmra.mxu0 %v66
    %v88 = vpop.f32.mrf.mxu0
    %v89 = vadd.f32 %v60, %v88
    %90 = vdwg.mxu0
    %v91 = vld [vmem:[%s1 + $0x30] sm:$0xff]
    %v92 = vld [vmem:[#allocation2 + $0x2] sm:$0xff]
    %v93 = vld [vmem:[#allocation2 + $0xa] sm:$0x3]
    %v95 = vsel %vm21, %v92, 0
    %v98 = vsel %vm21, %v93, 0
    %100 = vmatpush.msra.mxu0 0.0
    %101 = vmatpush.msra.mxu0 0.0
    %102 = vmatpush.msra.mxu0 0.0
    %103 = vmatpush.msra.mxu0 0.0
    %104 = vmatpush.msra.mxu0 0.0
    %105 = vmatpush.msra.mxu0 0.0
    %106 = vmatpush.msra.mxu0 0.0
    %107 = vmatpush.msra.mxu0 0.0
    %108 = vmatpush.msra.mxu0 0.0
    %109 = vmatpush.msra.mxu0 0.0
    %110 = vmatpush.msra.mxu0 0.0
    %111 = vmatpush.msra.mxu0 0.0
    %112 = vmatpush.msra.mxu0 0.0
    %113 = vmatpush.msra.mxu0 0.0
    %114 = vmatpush.msra.mxu0 0.0
    %115 = vmatpush.msra.mxu0 %v91
    %116 = vmatmul.f32.gmra.mxu0 %v95
    %v117 = vpop.f32.mrf.mxu0
    %v118 = vadd.f32 0.0, %v117
    %119 = vmatmul.f32.gmra.mxu0 %v98
    %v120 = vpop.f32.mrf.mxu0
    %v121 = vadd.f32 0.0, %v120
    %122 = vdwg.mxu0
    %v123 = vadd.f32 %v86, %v118
    %v124 = vadd.f32 %v89, %v121
    %v125 = vld [vmem:[%s1 + $0x38] sm:$0xff]
    %v126 = vld [vmem:[#allocation2 + $0x3] sm:$0xff]
    %v127 = vld [vmem:[#allocation2 + $0xb] sm:$0x3]
    %v129 = vsel %vm21, %v126, 0
    %v132 = vsel %vm21, %v127, 0
    %134 = vmatpush.msra.mxu0 0.0
    %135 = vmatpush.msra.mxu0 0.0
    %136 = vmatpush.msra.mxu0 0.0
    %137 = vmatpush.msra.mxu0 0.0
    %138 = vmatpush.msra.mxu0 0.0
    %139 = vmatpush.msra.mxu0 0.0
    %140 = vmatpush.msra.mxu0 0.0
    %141 = vmatpush.msra.mxu0 0.0
    %142 = vmatpush.msra.mxu0 0.0
    %143 = vmatpush.msra.mxu0 0.0
    %144 = vmatpush.msra.mxu0 0.0
    %145 = vmatpush.msra.mxu0 0.0
    %146 = vmatpush.msra.mxu0 0.0
    %147 = vmatpush.msra.mxu0 0.0
    %148 = vmatpush.msra.mxu0 0.0
    %149 = vmatpush.msra.mxu0 %v125
    %150 = vmatmul.f32.gmra.mxu0 %v129
    %v151 = vpop.f32.mrf.mxu0
    %v152 = vadd.f32 0.0, %v151
    %153 = vmatmul.f32.gmra.mxu0 %v132
    %v154 = vpop.f32.mrf.mxu0
    %v155 = vadd.f32 0.0, %v154
    %156 = vdwg.mxu0
    %v157 = vadd.f32 %v123, %v152
    %v158 = vadd.f32 %v124, %v155
    %v159 = vld [vmem:[%s1 + $0x40] sm:$0xff]
    %v160 = vld [vmem:[#allocation2 + $0x4] sm:$0xff]
    %v161 = vld [vmem:[#allocation2 + $0xc] sm:$0x3]
    %v163 = vsel %vm21, %v160, 0
    %v166 = vsel %vm21, %v161, 0
    %168 = vmatpush.msra.mxu0 0.0
    %169 = vmatpush.msra.mxu0 0.0
    %170 = vmatpush.msra.mxu0 0.0
    %171 = vmatpush.msra.mxu0 0.0
    %172 = vmatpush.msra.mxu0 0.0
    %173 = vmatpush.msra.mxu0 0.0
    %174 = vmatpush.msra.mxu0 0.0
    %175 = vmatpush.msra.mxu0 0.0
    %176 = vmatpush.msra.mxu0 0.0
    %177 = vmatpush.msra.mxu0 0.0
    %178 = vmatpush.msra.mxu0 0.0
    %179 = vmatpush.msra.mxu0 0.0
    %180 = vmatpush.msra.mxu0 0.0
    %181 = vmatpush.msra.mxu0 0.0
    %182 = vmatpush.msra.mxu0 0.0
    %183 = vmatpush.msra.mxu0 %v159
    %184 = vmatmul.f32.gmra.mxu0 %v163
    %v185 = vpop.f32.mrf.mxu0
    %v186 = vadd.f32 0.0, %v185
    %187 = vmatmul.f32.gmra.mxu0 %v166
    %v188 = vpop.f32.mrf.mxu0
    %v189 = vadd.f32 0.0, %v188
    %190 = vdwg.mxu0
    %v191 = vadd.f32 %v157, %v186
    %v192 = vadd.f32 %v158, %v189
    %v193 = vsel %vm21, %v191, 0.0
    %vm194 = vcmask 58368
    %v195 = vsel %vm194, %v192, 0.0
    %v196 = vadd.f32 %v193, %v195
    %v197 = vrot.slane %v196, 4
    %v198 = vadd.f32 %v196, %v197
    %v199 = vrot.slane %v198, 2
    %v200 = vadd.f32 %v198, %v199
    %v201 = vrot.slane %v200, 1
    %v202 = vadd.f32 %v200, %v201
    %v203 = vrcp.pop 10.0
    %v204 = vmul.f32 10.0, %v203
    %v205 = vsub.f32 1.0, %v204
    %v206 = vmul.f32 %v203, %v205
    %v207 = vadd.f32 %v203, %v206
    %vm208 = vweird.f32 %v203
    %v209 = vsel %vm208, %v203, %v207
    %v210 = vmul.f32 %v202, %v209
    %v211 = vsub.f32 %v191, %v210
    %v212 = vsub.f32 %v192, %v210
    %v213 = vmul.f32 %v211, %v211
    %v214 = vmul.f32 %v212, %v212
    %v215 = vsel %vm21, %v213, 0.0
    %v216 = vsel %vm194, %v214, 0.0
    %v217 = vadd.f32 %v215, %v216
    %v218 = vrot.slane %v217, 4
    %v219 = vadd.f32 %v217, %v218
    %v220 = vrot.slane %v219, 2
    %v221 = vadd.f32 %v219, %v220
    %v222 = vrot.slane %v221, 1
    %v223 = vadd.f32 %v221, %v222
    %v224 = vmul.f32 %v223, %v209
    %v225 = vadd.f32 %v224, 1e-05
    %v226 = vrsqrt.pop %v225
    %v227 = vmul.f32 %v226, %v225
    %v228 = vmul.f32 %v227, %v226
    %v229 = vmul.f32 0.5, %v228
    %v230 = vsub.f32 1.5, %v229
    %v231 = vmul.f32 %v226, %v230
    %vm232 = vweird.f32 %v225
    %vm233 = vweird.f32 %v226
    %vm234 = vmor %vm232, %vm233
    %v235 = vsel %vm234, %v226, %v231
    %v236 = vmul.f32 %v211, %v235
    %v237 = vperm.slane %v18, 0
    %v238 = vmul.f32 %v236, %v237
    %v239 = vperm.slane %v19, 0
    %v240 = vadd.f32 %v238, %v239
    %v241 = vmin.f32 %v240, 20.0
    %v242 = vmul.f32 %v241, 1.442695
    %v243 = vpow.pop %v242
    %v244 = vadd.f32 %v243, 2.0
    %v245 = vmul.f32 %v243, %v244
    %v246 = vadd.f32 %v245, 2.0
    %v247 = vrcp.pop %v246
    %v248 = vmul.f32 %v246, %v247
    %v249 = vsub.f32 1.0, %v248
    %v250 = vmul.f32 %v247, %v249
    %v251 = vadd.f32 %v247, %v250
    %vm252 = vweird.f32 %v246
    %vm253 = vweird.f32 %v247
    %vm254 = vmor %vm252, %vm253
    %v255 = vsel %vm254, %v247, %v251
    %v256 = vand.u32 2147483647, %v246
    %vm257 = vcmp.eq.f32.partialorder %v256, 8.507059e+37
    %v258 = vand.u32 %v246, 2147483648
    %v259 = vor.u32 1.1754944e-38, %v258
    %v260 = vsel %vm257, %v259, %v255
    %v261 = vmul.f32 %v245, %v260
    %v262 = vmul.f32 %v240, %v261
    %vm263 = vcmask 63488
    %v264 = vsel %vm263, %v262, 0.0
    %v265 = vrot.slane %v264, 4
    %v266 = vadd.f32 %v264, %v265
    %v267 = vrot.slane %v266, 2
    %v268 = vadd.f32 %v266, %v267
    %v269 = vrot.slane %v268, 1
    %v270 = vadd.f32 %v268, %v269
    %v271 = vmul.f32 %v270, 0.125
    %v272 = vlaneseq
    %v273 = vshrl.u32 %v272, 7
    %v274 = vlaneseq
    %v275 = vand.u32 %v274, 127
    %vm276 = vcmp.eq.s32.totalorder %v273, %v275
    %v277 = vsel %vm276, 1, 0
    %v278 = vcvt.s32.f32 %v277
    %v279 = vmul.f32 %v271, %v278
    %v280 = vsel %vm21, %v279, 0.0
    %281 = vadd.xlane.f32.xlu0 %v280
    %v282 = vpop.xlane.xlu0 %281
    %v283 = vperm.slane %v15, 0
    %v284 = vmul.f32 %v282, %v283
    %v285 = vperm.slane %v16, 0
    %v286 = vadd.f32 %v284, %v285
    %vm287 = vcmp.ge.s32.totalorder %v275, 16
    %vm288 = vcmp.lt.s32.totalorder %v275, 24
    %vm289 = vmand %vm287, %vm288
    %v290 = vsel %vm289, 1.0, 0.5
    %v291 = vsel %vm289, 0.0, 0.5
    %v293 = vsel %vm21, 0.0, 0
    %295 = vmatpush.msra.mxu0 0.0
    %296 = vmatpush.msra.mxu0 0.0
    %297 = vmatpush.msra.mxu0 0.0
    %298 = vmatpush.msra.mxu0 0.0
    %299 = vmatpush.msra.mxu0 0.0
    %300 = vmatpush.msra.mxu0 0.0
    %301 = vmatpush.msra.mxu0 0.0
    %302 = vmatpush.msra.mxu0 0.0
    %303 = vmatpush.msra.mxu0 0.0
    %304 = vmatpush.msra.mxu0 0.0
    %305 = vmatpush.msra.mxu0 0.0
    %306 = vmatpush.msra.mxu0 0.0
    %307 = vmatpush.msra.mxu0 0.0
    %308 = vmatpush.msra.mxu0 0.0
    %309 = vmatpush.msra.mxu0 0.0
    %310 = vmatpush.msra.mxu0 %v12
    %311 = vmatmul.f32.gmra.mxu0 %v293
    %v312 = vpop.f32.mrf.mxu0
    %v313 = vadd.f32 0.0, %v312
    %314 = vdwg.mxu0
    %315 = vmatpush.msra.mxu0 0.0
    %316 = vmatpush.msra.mxu0 0.0
    %317 = vmatpush.msra.mxu0 0.0
    %318 = vmatpush.msra.mxu0 0.0
    %319 = vmatpush.msra.mxu0 0.0
    %320 = vmatpush.msra.mxu0 0.0
    %321 = vmatpush.msra.mxu0 0.0
    %322 = vmatpush.msra.mxu0 0.0
    %323 = vmatpush.msra.mxu0 0.0
    %324 = vmatpush.msra.mxu0 0.0
    %325 = vmatpush.msra.mxu0 0.0
    %326 = vmatpush.msra.mxu0 0.0
    %327 = vmatpush.msra.mxu0 0.0
    %328 = vmatpush.msra.mxu0 0.0
    %329 = vmatpush.msra.mxu0 0.0
    %330 = vmatpush.msra.mxu0 %v13
    %331 = vmatmul.f32.gmra.mxu0 %v293
    %v332 = vpop.f32.mrf.mxu0
    %v333 = vadd.f32 0.0, %v332
    %334 = vdwg.mxu0
    %v335 = vadd.f32 %v286, %v313
    %v336 = vmul.f32 %v290, %v335
    %v337 = vtanh.pop %v336
    %v338 = vmul.f32 %v290, %v337
    %v339 = vadd.f32 %v338, %v291
    %v340 = vmul.f32 %v339, 0.0
    %342 = vrot.lane.b32.xlu0 %v339, 112
    %v343 = vpop.permute.xlu0 %342
    %v345 = vmul.f32 %v339, %v343
    %347 = vrot.lane.b32.xlu0 %v345, 8
    %v348 = vpop.permute.xlu0 %347
    %v350 = vadd.f32 %v340, %v348
    %v351 = vtanh.pop %v350
    %353 = vrot.lane.b32.xlu0 %v351, 16
    %v354 = vpop.permute.xlu0 %353
    %v356 = vmul.f32 %v339, %v354
    %358 = vrot.lane.b32.xlu0 %v356, 104
    %v359 = vpop.permute.xlu0 %358
    %v360 = vsel %vm21, %v359, 0
    %362 = vmatpush.msra.mxu0 0.0
    %363 = vmatpush.msra.mxu0 0.0
    %364 = vmatpush.msra.mxu0 0.0
    %365 = vmatpush.msra.mxu0 0.0
    %366 = vmatpush.msra.mxu0 0.0
    %367 = vmatpush.msra.mxu0 0.0
    %368 = vmatpush.msra.mxu0 0.0
    %369 = vmatpush.msra.mxu0 0.0
    %370 = vmatpush.msra.mxu0 0.0
    %371 = vmatpush.msra.mxu0 0.0
    %372 = vmatpush.msra.mxu0 0.0
    %373 = vmatpush.msra.mxu0 0.0
    %374 = vmatpush.msra.mxu0 0.0
    %375 = vmatpush.msra.mxu0 0.0
    %376 = vmatpush.msra.mxu0 0.0
    %377 = vmatpush.msra.mxu0 %v14
    %378 = vmatmul.f32.gmra.mxu0 %v360
    %v379 = vpop.f32.mrf.mxu0
    %v380 = vadd.f32 %v333, %v379
    %381 = vdwg.mxu0
    %v382 = vadd.f32 %v380, %v17
    %v383 = vmul.f32 %v290, %v382
    %v384 = vtanh.pop %v383
    %v385 = vmul.f32 %v290, %v384
    %v386 = vadd.f32 %v385, %v291
    %v387 = vmul.f32 %v386, 0.0
    %389 = vrot.lane.b32.xlu0 %v386, 112
    %v390 = vpop.permute.xlu0 %389
    %v392 = vmul.f32 %v386, %v390
    %394 = vrot.lane.b32.xlu0 %v392, 8
    %v395 = vpop.permute.xlu0 %394
    %v397 = vadd.f32 %v387, %v395
    %v398 = vtanh.pop %v397
    %400 = vrot.lane.b32.xlu0 %v398, 16
    %v401 = vpop.permute.xlu0 %400
    %v403 = vmul.f32 %v386, %v401
    %404 = vmatpush.msra.mxu0 0.0
    %405 = vmatpush.msra.mxu0 0.0
    %406 = vmatpush.msra.mxu0 0.0
    %407 = vmatpush.msra.mxu0 0.0
    %408 = vmatpush.msra.mxu0 0.0
    %409 = vmatpush.msra.mxu0 0.0
    %410 = vmatpush.msra.mxu0 0.0
    %411 = vmatpush.msra.mxu0 0.0
    %412 = vmatpush.msra.mxu0 0.0
    %413 = vmatpush.msra.mxu0 0.0
    %414 = vmatpush.msra.mxu0 0.0
    %415 = vmatpush.msra.mxu0 0.0
    %416 = vmatpush.msra.mxu0 0.0
    %417 = vmatpush.msra.mxu0 0.0
    %418 = vmatpush.msra.mxu0 0.0
    %419 = vmatpush.msra.mxu0 %v12
    %420 = vmatmul.f32.gmra.mxu0 %v360
    %v421 = vpop.f32.mrf.mxu0
    %v422 = vadd.f32 0.0, %v421
    %423 = vdwg.mxu0
    %425 = vrot.lane.b32.xlu0 %v403, 104
    %v426 = vpop.permute.xlu0 %425
    %v427 = vsel %vm21, %v426, 0
    %429 = vmatpush.msra.mxu0 0.0
    %430 = vmatpush.msra.mxu0 0.0
    %431 = vmatpush.msra.mxu0 0.0
    %432 = vmatpush.msra.mxu0 0.0
    %433 = vmatpush.msra.mxu0 0.0
    %434 = vmatpush.msra.mxu0 0.0
    %435 = vmatpush.msra.mxu0 0.0
    %436 = vmatpush.msra.mxu0 0.0
    %437 = vmatpush.msra.mxu0 0.0
    %438 = vmatpush.msra.mxu0 0.0
    %439 = vmatpush.msra.mxu0 0.0
    %440 = vmatpush.msra.mxu0 0.0
    %441 = vmatpush.msra.mxu0 0.0
    %442 = vmatpush.msra.mxu0 0.0
    %443 = vmatpush.msra.mxu0 0.0
    %444 = vmatpush.msra.mxu0 %v13
    %445 = vmatmul.f32.gmra.mxu0 %v427
    %v446 = vpop.f32.mrf.mxu0
    %v447 = vadd.f32 0.0, %v446
    %448 = vdwg.mxu0
    %v450 = vrot.slane %v422, 7
    %v452 = vadd.f32 %v286, %v450
    %v453 = vmul.f32 %v290, %v452
    %v454 = vtanh.pop %v453
    %v455 = vmul.f32 %v290, %v454
    %v456 = vadd.f32 %v455, %v291
    %v458 = vrot.slane %v350, 7
    %v460 = vmul.f32 %v456, %v458
    %462 = vrot.lane.b32.xlu0 %v456, 112
    %v463 = vpop.permute.xlu0 %462
    %v465 = vmul.f32 %v456, %v463
    %467 = vrot.lane.b32.xlu0 %v465, 8
    %v468 = vpop.permute.xlu0 %467
    %v470 = vadd.f32 %v460, %v468
    %v471 = vtanh.pop %v470
    %473 = vrot.lane.b32.xlu0 %v471, 16
    %v474 = vpop.permute.xlu0 %473
    %v476 = vmul.f32 %v456, %v474
    %v478 = vrot.slane %v476, 1
    %479 = vrot.lane.b32.xlu0 %v478, 104
    %v480 = vpop.permute.xlu0 %479
    %v481 = vsel %vm21, %v480, 0
    %483 = vmatpush.msra.mxu0 0.0
    %484 = vmatpush.msra.mxu0 0.0
    %485 = vmatpush.msra.mxu0 0.0
    %486 = vmatpush.msra.mxu0 0.0
    %487 = vmatpush.msra.mxu0 0.0
    %488 = vmatpush.msra.mxu0 0.0
    %489 = vmatpush.msra.mxu0 0.0
    %490 = vmatpush.msra.mxu0 0.0
    %491 = vmatpush.msra.mxu0 0.0
    %492 = vmatpush.msra.mxu0 0.0
    %493 = vmatpush.msra.mxu0 0.0
    %494 = vmatpush.msra.mxu0 0.0
    %495 = vmatpush.msra.mxu0 0.0
    %496 = vmatpush.msra.mxu0 0.0
    %497 = vmatpush.msra.mxu0 0.0
    %498 = vmatpush.msra.mxu0 %v14
    %499 = vmatmul.f32.gmra.mxu0 %v481
    %v500 = vpop.f32.mrf.mxu0
    %v501 = vadd.f32 %v447, %v500
    %502 = vdwg.mxu0
    %v503 = vadd.f32 %v501, %v17
    %v504 = vmul.f32 %v290, %v503
    %v505 = vtanh.pop %v504
    %v506 = vmul.f32 %v290, %v505
    %v507 = vadd.f32 %v506, %v291
    %v508 = vmul.f32 %v507, %v397
    %510 = vrot.lane.b32.xlu0 %v507, 112
    %v511 = vpop.permute.xlu0 %510
    %v513 = vmul.f32 %v507, %v511
    %515 = vrot.lane.b32.xlu0 %v513, 8
    %v516 = vpop.permute.xlu0 %515
    %v518 = vadd.f32 %v508, %v516
    %v519 = vtanh.pop %v518
    %521 = vrot.lane.b32.xlu0 %v519, 16
    %v522 = vpop.permute.xlu0 %521
    %v524 = vmul.f32 %v507, %v522
    %525 = vmatpush.msra.mxu0 0.0
    %526 = vmatpush.msra.mxu0 0.0
    %527 = vmatpush.msra.mxu0 0.0
    %528 = vmatpush.msra.mxu0 0.0
    %529 = vmatpush.msra.mxu0 0.0
    %530 = vmatpush.msra.mxu0 0.0
    %531 = vmatpush.msra.mxu0 0.0
    %532 = vmatpush.msra.mxu0 0.0
    %533 = vmatpush.msra.mxu0 0.0
    %534 = vmatpush.msra.mxu0 0.0
    %535 = vmatpush.msra.mxu0 0.0
    %536 = vmatpush.msra.mxu0 0.0
    %537 = vmatpush.msra.mxu0 0.0
    %538 = vmatpush.msra.mxu0 0.0
    %539 = vmatpush.msra.mxu0 0.0
    %540 = vmatpush.msra.mxu0 %v12
    %541 = vmatmul.f32.gmra.mxu0 %v481
    %v542 = vpop.f32.mrf.mxu0
    %v543 = vadd.f32 0.0, %v542
    %544 = vdwg.mxu0
    %546 = vrot.lane.b32.xlu0 %v524, 104
    %v547 = vpop.permute.xlu0 %546
    %v548 = vsel %vm21, %v547, 0
    %550 = vmatpush.msra.mxu0 0.0
    %551 = vmatpush.msra.mxu0 0.0
    %552 = vmatpush.msra.mxu0 0.0
    %553 = vmatpush.msra.mxu0 0.0
    %554 = vmatpush.msra.mxu0 0.0
    %555 = vmatpush.msra.mxu0 0.0
    %556 = vmatpush.msra.mxu0 0.0
    %557 = vmatpush.msra.mxu0 0.0
    %558 = vmatpush.msra.mxu0 0.0
    %559 = vmatpush.msra.mxu0 0.0
    %560 = vmatpush.msra.mxu0 0.0
    %561 = vmatpush.msra.mxu0 0.0
    %562 = vmatpush.msra.mxu0 0.0
    %563 = vmatpush.msra.mxu0 0.0
    %564 = vmatpush.msra.mxu0 0.0
    %565 = vmatpush.msra.mxu0 %v13
    %566 = vmatmul.f32.gmra.mxu0 %v548
    %v567 = vpop.f32.mrf.mxu0
    %v568 = vadd.f32 0.0, %v567
    %569 = vdwg.mxu0
    %v571 = vrot.slane %v543, 6
    %v573 = vadd.f32 %v286, %v571
    %v574 = vmul.f32 %v290, %v573
    %v575 = vtanh.pop %v574
    %v576 = vmul.f32 %v290, %v575
    %v577 = vadd.f32 %v576, %v291
    %v579 = vrot.slane %v470, 7
    %v581 = vmul.f32 %v577, %v579
    %583 = vrot.lane.b32.xlu0 %v577, 112
    %v584 = vpop.permute.xlu0 %583
    %v586 = vmul.f32 %v577, %v584
    %588 = vrot.lane.b32.xlu0 %v586, 8
    %v589 = vpop.permute.xlu0 %588
    %v591 = vadd.f32 %v581, %v589
    %v592 = vtanh.pop %v591
    %594 = vrot.lane.b32.xlu0 %v592, 16
    %v595 = vpop.permute.xlu0 %594
    %v597 = vmul.f32 %v577, %v595
    %v599 = vrot.slane %v597, 2
    %600 = vrot.lane.b32.xlu0 %v599, 104
    %v601 = vpop.permute.xlu0 %600
    %v602 = vsel %vm21, %v601, 0
    %604 = vmatpush.msra.mxu0 0.0
    %605 = vmatpush.msra.mxu0 0.0
    %606 = vmatpush.msra.mxu0 0.0
    %607 = vmatpush.msra.mxu0 0.0
    %608 = vmatpush.msra.mxu0 0.0
    %609 = vmatpush.msra.mxu0 0.0
    %610 = vmatpush.msra.mxu0 0.0
    %611 = vmatpush.msra.mxu0 0.0
    %612 = vmatpush.msra.mxu0 0.0
    %613 = vmatpush.msra.mxu0 0.0
    %614 = vmatpush.msra.mxu0 0.0
    %615 = vmatpush.msra.mxu0 0.0
    %616 = vmatpush.msra.mxu0 0.0
    %617 = vmatpush.msra.mxu0 0.0
    %618 = vmatpush.msra.mxu0 0.0
    %619 = vmatpush.msra.mxu0 %v14
    %620 = vmatmul.f32.gmra.mxu0 %v602
    %v621 = vpop.f32.mrf.mxu0
    %v622 = vadd.f32 %v568, %v621
    %623 = vdwg.mxu0
    %v624 = vadd.f32 %v622, %v17
    %v625 = vmul.f32 %v290, %v624
    %v626 = vtanh.pop %v625
    %v627 = vmul.f32 %v290, %v626
    %v628 = vadd.f32 %v627, %v291
    %v629 = vmul.f32 %v628, %v518
    %631 = vrot.lane.b32.xlu0 %v628, 112
    %v632 = vpop.permute.xlu0 %631
    %v634 = vmul.f32 %v628, %v632
    %636 = vrot.lane.b32.xlu0 %v634, 8
    %v637 = vpop.permute.xlu0 %636
    %v639 = vadd.f32 %v629, %v637
    %v640 = vtanh.pop %v639
    %642 = vrot.lane.b32.xlu0 %v640, 16
    %v643 = vpop.permute.xlu0 %642
    %v645 = vmul.f32 %v628, %v643
    %646 = vmatpush.msra.mxu0 0.0
    %647 = vmatpush.msra.mxu0 0.0
    %648 = vmatpush.msra.mxu0 0.0
    %649 = vmatpush.msra.mxu0 0.0
    %650 = vmatpush.msra.mxu0 0.0
    %651 = vmatpush.msra.mxu0 0.0
    %652 = vmatpush.msra.mxu0 0.0
    %653 = vmatpush.msra.mxu0 0.0
    %654 = vmatpush.msra.mxu0 0.0
    %655 = vmatpush.msra.mxu0 0.0
    %656 = vmatpush.msra.mxu0 0.0
    %657 = vmatpush.msra.mxu0 0.0
    %658 = vmatpush.msra.mxu0 0.0
    %659 = vmatpush.msra.mxu0 0.0
    %660 = vmatpush.msra.mxu0 0.0
    %661 = vmatpush.msra.mxu0 %v12
    %662 = vmatmul.f32.gmra.mxu0 %v602
    %v663 = vpop.f32.mrf.mxu0
    %v664 = vadd.f32 0.0, %v663
    %665 = vdwg.mxu0
    %667 = vrot.lane.b32.xlu0 %v645, 104
    %v668 = vpop.permute.xlu0 %667
    %v669 = vsel %vm21, %v668, 0
    %671 = vmatpush.msra.mxu0 0.0
    %672 = vmatpush.msra.mxu0 0.0
    %673 = vmatpush.msra.mxu0 0.0
    %674 = vmatpush.msra.mxu0 0.0
    %675 = vmatpush.msra.mxu0 0.0
    %676 = vmatpush.msra.mxu0 0.0
    %677 = vmatpush.msra.mxu0 0.0
    %678 = vmatpush.msra.mxu0 0.0
    %679 = vmatpush.msra.mxu0 0.0
    %680 = vmatpush.msra.mxu0 0.0
    %681 = vmatpush.msra.mxu0 0.0
    %682 = vmatpush.msra.mxu0 0.0
    %683 = vmatpush.msra.mxu0 0.0
    %684 = vmatpush.msra.mxu0 0.0
    %685 = vmatpush.msra.mxu0 0.0
    %686 = vmatpush.msra.mxu0 %v13
    %687 = vmatmul.f32.gmra.mxu0 %v669
    %v688 = vpop.f32.mrf.mxu0
    %v689 = vadd.f32 0.0, %v688
    %690 = vdwg.mxu0
    %v692 = vrot.slane %v664, 5
    %v694 = vadd.f32 %v286, %v692
    %v695 = vmul.f32 %v290, %v694
    %v696 = vtanh.pop %v695
    %v697 = vmul.f32 %v290, %v696
    %v698 = vadd.f32 %v697, %v291
    %v700 = vrot.slane %v591, 7
    %v702 = vmul.f32 %v698, %v700
    %704 = vrot.lane.b32.xlu0 %v698, 112
    %v705 = vpop.permute.xlu0 %704
    %v707 = vmul.f32 %v698, %v705
    %709 = vrot.lane.b32.xlu0 %v707, 8
    %v710 = vpop.permute.xlu0 %709
    %v712 = vadd.f32 %v702, %v710
    %v713 = vtanh.pop %v712
    %715 = vrot.lane.b32.xlu0 %v713, 16
    %v716 = vpop.permute.xlu0 %715
    %v718 = vmul.f32 %v698, %v716
    %v720 = vrot.slane %v718, 3
    %721 = vrot.lane.b32.xlu0 %v720, 104
    %v722 = vpop.permute.xlu0 %721
    %v723 = vsel %vm21, %v722, 0
    %725 = vmatpush.msra.mxu0 0.0
    %726 = vmatpush.msra.mxu0 0.0
    %727 = vmatpush.msra.mxu0 0.0
    %728 = vmatpush.msra.mxu0 0.0
    %729 = vmatpush.msra.mxu0 0.0
    %730 = vmatpush.msra.mxu0 0.0
    %731 = vmatpush.msra.mxu0 0.0
    %732 = vmatpush.msra.mxu0 0.0
    %733 = vmatpush.msra.mxu0 0.0
    %734 = vmatpush.msra.mxu0 0.0
    %735 = vmatpush.msra.mxu0 0.0
    %736 = vmatpush.msra.mxu0 0.0
    %737 = vmatpush.msra.mxu0 0.0
    %738 = vmatpush.msra.mxu0 0.0
    %739 = vmatpush.msra.mxu0 0.0
    %740 = vmatpush.msra.mxu0 %v14
    %741 = vmatmul.f32.gmra.mxu0 %v723
    %v742 = vpop.f32.mrf.mxu0
    %v743 = vadd.f32 %v689, %v742
    %744 = vdwg.mxu0
    %v745 = vadd.f32 %v743, %v17
    %v746 = vmul.f32 %v290, %v745
    %v747 = vtanh.pop %v746
    %v748 = vmul.f32 %v290, %v747
    %v749 = vadd.f32 %v748, %v291
    %v750 = vmul.f32 %v749, %v639
    %752 = vrot.lane.b32.xlu0 %v749, 112
    %v753 = vpop.permute.xlu0 %752
    %v755 = vmul.f32 %v749, %v753
    %757 = vrot.lane.b32.xlu0 %v755, 8
    %v758 = vpop.permute.xlu0 %757
    %v760 = vadd.f32 %v750, %v758
    %v761 = vtanh.pop %v760
    %763 = vrot.lane.b32.xlu0 %v761, 16
    %v764 = vpop.permute.xlu0 %763
    %v766 = vmul.f32 %v749, %v764
    %767 = vmatpush.msra.mxu0 0.0
    %768 = vmatpush.msra.mxu0 0.0
    %769 = vmatpush.msra.mxu0 0.0
    %770 = vmatpush.msra.mxu0 0.0
    %771 = vmatpush.msra.mxu0 0.0
    %772 = vmatpush.msra.mxu0 0.0
    %773 = vmatpush.msra.mxu0 0.0
    %774 = vmatpush.msra.mxu0 0.0
    %775 = vmatpush.msra.mxu0 0.0
    %776 = vmatpush.msra.mxu0 0.0
    %777 = vmatpush.msra.mxu0 0.0
    %778 = vmatpush.msra.mxu0 0.0
    %779 = vmatpush.msra.mxu0 0.0
    %780 = vmatpush.msra.mxu0 0.0
    %781 = vmatpush.msra.mxu0 0.0
    %782 = vmatpush.msra.mxu0 %v12
    %783 = vmatmul.f32.gmra.mxu0 %v723
    %v784 = vpop.f32.mrf.mxu0
    %v785 = vadd.f32 0.0, %v784
    %786 = vdwg.mxu0
    %788 = vrot.lane.b32.xlu0 %v766, 104
    %v789 = vpop.permute.xlu0 %788
    %v790 = vsel %vm21, %v789, 0
    %792 = vmatpush.msra.mxu0 0.0
    %793 = vmatpush.msra.mxu0 0.0
    %794 = vmatpush.msra.mxu0 0.0
    %795 = vmatpush.msra.mxu0 0.0
    %796 = vmatpush.msra.mxu0 0.0
    %797 = vmatpush.msra.mxu0 0.0
    %798 = vmatpush.msra.mxu0 0.0
    %799 = vmatpush.msra.mxu0 0.0
    %800 = vmatpush.msra.mxu0 0.0
    %801 = vmatpush.msra.mxu0 0.0
    %802 = vmatpush.msra.mxu0 0.0
    %803 = vmatpush.msra.mxu0 0.0
    %804 = vmatpush.msra.mxu0 0.0
    %805 = vmatpush.msra.mxu0 0.0
    %806 = vmatpush.msra.mxu0 0.0
    %807 = vmatpush.msra.mxu0 %v13
    %808 = vmatmul.f32.gmra.mxu0 %v790
    %v809 = vpop.f32.mrf.mxu0
    %v810 = vadd.f32 0.0, %v809
    %811 = vdwg.mxu0
    %v813 = vrot.slane %v785, 4
    %v815 = vadd.f32 %v286, %v813
    %v816 = vmul.f32 %v290, %v815
    %v817 = vtanh.pop %v816
    %v818 = vmul.f32 %v290, %v817
    %v819 = vadd.f32 %v818, %v291
    %v821 = vrot.slane %v712, 7
    %v823 = vmul.f32 %v819, %v821
    %825 = vrot.lane.b32.xlu0 %v819, 112
    %v826 = vpop.permute.xlu0 %825
    %v828 = vmul.f32 %v819, %v826
    %830 = vrot.lane.b32.xlu0 %v828, 8
    %v831 = vpop.permute.xlu0 %830
    %v833 = vadd.f32 %v823, %v831
    %v834 = vtanh.pop %v833
    %836 = vrot.lane.b32.xlu0 %v834, 16
    %v837 = vpop.permute.xlu0 %836
    %v839 = vmul.f32 %v819, %v837
    %v841 = vrot.slane %v839, 4
    %842 = vrot.lane.b32.xlu0 %v841, 104
    %v843 = vpop.permute.xlu0 %842
    %v844 = vsel %vm21, %v843, 0
    %846 = vmatpush.msra.mxu0 0.0
    %847 = vmatpush.msra.mxu0 0.0
    %848 = vmatpush.msra.mxu0 0.0
    %849 = vmatpush.msra.mxu0 0.0
    %850 = vmatpush.msra.mxu0 0.0
    %851 = vmatpush.msra.mxu0 0.0
    %852 = vmatpush.msra.mxu0 0.0
    %853 = vmatpush.msra.mxu0 0.0
    %854 = vmatpush.msra.mxu0 0.0
    %855 = vmatpush.msra.mxu0 0.0
    %856 = vmatpush.msra.mxu0 0.0
    %857 = vmatpush.msra.mxu0 0.0
    %858 = vmatpush.msra.mxu0 0.0
    %859 = vmatpush.msra.mxu0 0.0
    %860 = vmatpush.msra.mxu0 0.0
    %861 = vmatpush.msra.mxu0 %v14
    %862 = vmatmul.f32.gmra.mxu0 %v844
    %v863 = vpop.f32.mrf.mxu0
    %v864 = vadd.f32 %v810, %v863
    %865 = vdwg.mxu0
    %v866 = vadd.f32 %v864, %v17
    %v867 = vmul.f32 %v290, %v866
    %v868 = vtanh.pop %v867
    %v869 = vmul.f32 %v290, %v868
    %v870 = vadd.f32 %v869, %v291
    %v871 = vmul.f32 %v870, %v760
    %873 = vrot.lane.b32.xlu0 %v870, 112
    %v874 = vpop.permute.xlu0 %873
    %v876 = vmul.f32 %v870, %v874
    %878 = vrot.lane.b32.xlu0 %v876, 8
    %v879 = vpop.permute.xlu0 %878
    %v881 = vadd.f32 %v871, %v879
    %v882 = vtanh.pop %v881
    %884 = vrot.lane.b32.xlu0 %v882, 16
    %v885 = vpop.permute.xlu0 %884
    %v887 = vmul.f32 %v870, %v885
    %888 = vmatpush.msra.mxu0 0.0
    %889 = vmatpush.msra.mxu0 0.0
    %890 = vmatpush.msra.mxu0 0.0
    %891 = vmatpush.msra.mxu0 0.0
    %892 = vmatpush.msra.mxu0 0.0
    %893 = vmatpush.msra.mxu0 0.0
    %894 = vmatpush.msra.mxu0 0.0
    %895 = vmatpush.msra.mxu0 0.0
    %896 = vmatpush.msra.mxu0 0.0
    %897 = vmatpush.msra.mxu0 0.0
    %898 = vmatpush.msra.mxu0 0.0
    %899 = vmatpush.msra.mxu0 0.0
    %900 = vmatpush.msra.mxu0 0.0
    %901 = vmatpush.msra.mxu0 0.0
    %902 = vmatpush.msra.mxu0 0.0
    %903 = vmatpush.msra.mxu0 %v12
    %904 = vmatmul.f32.gmra.mxu0 %v844
    %v905 = vpop.f32.mrf.mxu0
    %v906 = vadd.f32 0.0, %v905
    %907 = vdwg.mxu0
    %909 = vrot.lane.b32.xlu0 %v887, 104
    %v910 = vpop.permute.xlu0 %909
    %v911 = vsel %vm21, %v910, 0
    %913 = vmatpush.msra.mxu0 0.0
    %914 = vmatpush.msra.mxu0 0.0
    %915 = vmatpush.msra.mxu0 0.0
    %916 = vmatpush.msra.mxu0 0.0
    %917 = vmatpush.msra.mxu0 0.0
    %918 = vmatpush.msra.mxu0 0.0
    %919 = vmatpush.msra.mxu0 0.0
    %920 = vmatpush.msra.mxu0 0.0
    %921 = vmatpush.msra.mxu0 0.0
    %922 = vmatpush.msra.mxu0 0.0
    %923 = vmatpush.msra.mxu0 0.0
    %924 = vmatpush.msra.mxu0 0.0
    %925 = vmatpush.msra.mxu0 0.0
    %926 = vmatpush.msra.mxu0 0.0
    %927 = vmatpush.msra.mxu0 0.0
    %928 = vmatpush.msra.mxu0 %v13
    %929 = vmatmul.f32.gmra.mxu0 %v911
    %v930 = vpop.f32.mrf.mxu0
    %v931 = vadd.f32 0.0, %v930
    %932 = vdwg.mxu0
    %v934 = vrot.slane %v906, 3
    %v936 = vadd.f32 %v286, %v934
    %v937 = vmul.f32 %v290, %v936
    %v938 = vtanh.pop %v937
    %v939 = vmul.f32 %v290, %v938
    %v940 = vadd.f32 %v939, %v291
    %v942 = vrot.slane %v833, 7
    %v944 = vmul.f32 %v940, %v942
    %946 = vrot.lane.b32.xlu0 %v940, 112
    %v947 = vpop.permute.xlu0 %946
    %v949 = vmul.f32 %v940, %v947
    %951 = vrot.lane.b32.xlu0 %v949, 8
    %v952 = vpop.permute.xlu0 %951
    %v954 = vadd.f32 %v944, %v952
    %v955 = vtanh.pop %v954
    %957 = vrot.lane.b32.xlu0 %v955, 16
    %v958 = vpop.permute.xlu0 %957
    %v960 = vmul.f32 %v940, %v958
    %v962 = vrot.slane %v960, 5
    %963 = vrot.lane.b32.xlu0 %v962, 104
    %v964 = vpop.permute.xlu0 %963
    %v965 = vsel %vm21, %v964, 0
    %967 = vmatpush.msra.mxu0 0.0
    %968 = vmatpush.msra.mxu0 0.0
    %969 = vmatpush.msra.mxu0 0.0
    %970 = vmatpush.msra.mxu0 0.0
    %971 = vmatpush.msra.mxu0 0.0
    %972 = vmatpush.msra.mxu0 0.0
    %973 = vmatpush.msra.mxu0 0.0
    %974 = vmatpush.msra.mxu0 0.0
    %975 = vmatpush.msra.mxu0 0.0
    %976 = vmatpush.msra.mxu0 0.0
    %977 = vmatpush.msra.mxu0 0.0
    %978 = vmatpush.msra.mxu0 0.0
    %979 = vmatpush.msra.mxu0 0.0
    %980 = vmatpush.msra.mxu0 0.0
    %981 = vmatpush.msra.mxu0 0.0
    %982 = vmatpush.msra.mxu0 %v14
    %983 = vmatmul.f32.gmra.mxu0 %v965
    %v984 = vpop.f32.mrf.mxu0
    %v985 = vadd.f32 %v931, %v984
    %986 = vdwg.mxu0
    %v987 = vadd.f32 %v985, %v17
    %v988 = vmul.f32 %v290, %v987
    %v989 = vtanh.pop %v988
    %v990 = vmul.f32 %v290, %v989
    %v991 = vadd.f32 %v990, %v291
    %v992 = vmul.f32 %v991, %v881
    %994 = vrot.lane.b32.xlu0 %v991, 112
    %v995 = vpop.permute.xlu0 %994
    %v997 = vmul.f32 %v991, %v995
    %999 = vrot.lane.b32.xlu0 %v997, 8
    %v1000 = vpop.permute.xlu0 %999
    %v1002 = vadd.f32 %v992, %v1000
    %v1003 = vtanh.pop %v1002
    %1005 = vrot.lane.b32.xlu0 %v1003, 16
    %v1006 = vpop.permute.xlu0 %1005
    %v1008 = vmul.f32 %v991, %v1006
    %1009 = vmatpush.msra.mxu0 0.0
    %1010 = vmatpush.msra.mxu0 0.0
    %1011 = vmatpush.msra.mxu0 0.0
    %1012 = vmatpush.msra.mxu0 0.0
    %1013 = vmatpush.msra.mxu0 0.0
    %1014 = vmatpush.msra.mxu0 0.0
    %1015 = vmatpush.msra.mxu0 0.0
    %1016 = vmatpush.msra.mxu0 0.0
    %1017 = vmatpush.msra.mxu0 0.0
    %1018 = vmatpush.msra.mxu0 0.0
    %1019 = vmatpush.msra.mxu0 0.0
    %1020 = vmatpush.msra.mxu0 0.0
    %1021 = vmatpush.msra.mxu0 0.0
    %1022 = vmatpush.msra.mxu0 0.0
    %1023 = vmatpush.msra.mxu0 0.0
    %1024 = vmatpush.msra.mxu0 %v12
    %1025 = vmatmul.f32.gmra.mxu0 %v965
    %v1026 = vpop.f32.mrf.mxu0
    %v1027 = vadd.f32 0.0, %v1026
    %1028 = vdwg.mxu0
    %1030 = vrot.lane.b32.xlu0 %v1008, 104
    %v1031 = vpop.permute.xlu0 %1030
    %v1032 = vsel %vm21, %v1031, 0
    %1034 = vmatpush.msra.mxu0 0.0
    %1035 = vmatpush.msra.mxu0 0.0
    %1036 = vmatpush.msra.mxu0 0.0
    %1037 = vmatpush.msra.mxu0 0.0
    %1038 = vmatpush.msra.mxu0 0.0
    %1039 = vmatpush.msra.mxu0 0.0
    %1040 = vmatpush.msra.mxu0 0.0
    %1041 = vmatpush.msra.mxu0 0.0
    %1042 = vmatpush.msra.mxu0 0.0
    %1043 = vmatpush.msra.mxu0 0.0
    %1044 = vmatpush.msra.mxu0 0.0
    %1045 = vmatpush.msra.mxu0 0.0
    %1046 = vmatpush.msra.mxu0 0.0
    %1047 = vmatpush.msra.mxu0 0.0
    %1048 = vmatpush.msra.mxu0 0.0
    %1049 = vmatpush.msra.mxu0 %v13
    %1050 = vmatmul.f32.gmra.mxu0 %v1032
    %v1051 = vpop.f32.mrf.mxu0
    %v1052 = vadd.f32 0.0, %v1051
    %1053 = vdwg.mxu0
    %v1055 = vrot.slane %v1027, 2
    %v1057 = vadd.f32 %v286, %v1055
    %v1058 = vmul.f32 %v290, %v1057
    %v1059 = vtanh.pop %v1058
    %v1060 = vmul.f32 %v290, %v1059
    %v1061 = vadd.f32 %v1060, %v291
    %v1063 = vrot.slane %v954, 7
    %v1065 = vmul.f32 %v1061, %v1063
    %1067 = vrot.lane.b32.xlu0 %v1061, 112
    %v1068 = vpop.permute.xlu0 %1067
    %v1070 = vmul.f32 %v1061, %v1068
    %1072 = vrot.lane.b32.xlu0 %v1070, 8
    %v1073 = vpop.permute.xlu0 %1072
    %v1075 = vadd.f32 %v1065, %v1073
    %v1076 = vtanh.pop %v1075
    %1078 = vrot.lane.b32.xlu0 %v1076, 16
    %v1079 = vpop.permute.xlu0 %1078
    %v1081 = vmul.f32 %v1061, %v1079
    %v1083 = vrot.slane %v1081, 6
    %1084 = vrot.lane.b32.xlu0 %v1083, 104
    %v1085 = vpop.permute.xlu0 %1084
    %v1086 = vsel %vm21, %v1085, 0
    %1088 = vmatpush.msra.mxu0 0.0
    %1089 = vmatpush.msra.mxu0 0.0
    %1090 = vmatpush.msra.mxu0 0.0
    %1091 = vmatpush.msra.mxu0 0.0
    %1092 = vmatpush.msra.mxu0 0.0
    %1093 = vmatpush.msra.mxu0 0.0
    %1094 = vmatpush.msra.mxu0 0.0
    %1095 = vmatpush.msra.mxu0 0.0
    %1096 = vmatpush.msra.mxu0 0.0
    %1097 = vmatpush.msra.mxu0 0.0
    %1098 = vmatpush.msra.mxu0 0.0
    %1099 = vmatpush.msra.mxu0 0.0
    %1100 = vmatpush.msra.mxu0 0.0
    %1101 = vmatpush.msra.mxu0 0.0
    %1102 = vmatpush.msra.mxu0 0.0
    %1103 = vmatpush.msra.mxu0 %v14
    %1104 = vmatmul.f32.gmra.mxu0 %v1086
    %v1105 = vpop.f32.mrf.mxu0
    %v1106 = vadd.f32 %v1052, %v1105
    %1107 = vdwg.mxu0
    %v1108 = vadd.f32 %v1106, %v17
    %v1109 = vmul.f32 %v290, %v1108
    %v1110 = vtanh.pop %v1109
    %v1111 = vmul.f32 %v290, %v1110
    %v1112 = vadd.f32 %v1111, %v291
    %v1113 = vmul.f32 %v1112, %v1002
    %1115 = vrot.lane.b32.xlu0 %v1112, 112
    %v1116 = vpop.permute.xlu0 %1115
    %v1118 = vmul.f32 %v1112, %v1116
    %1120 = vrot.lane.b32.xlu0 %v1118, 8
    %v1121 = vpop.permute.xlu0 %1120
    %v1123 = vadd.f32 %v1113, %v1121
    %v1124 = vtanh.pop %v1123
    %1126 = vrot.lane.b32.xlu0 %v1124, 16
    %v1127 = vpop.permute.xlu0 %1126
    %v1129 = vmul.f32 %v1112, %v1127
    %1130 = vmatpush.msra.mxu0 0.0
    %1131 = vmatpush.msra.mxu0 0.0
    %1132 = vmatpush.msra.mxu0 0.0
    %1133 = vmatpush.msra.mxu0 0.0
    %1134 = vmatpush.msra.mxu0 0.0
    %1135 = vmatpush.msra.mxu0 0.0
    %1136 = vmatpush.msra.mxu0 0.0
    %1137 = vmatpush.msra.mxu0 0.0
    %1138 = vmatpush.msra.mxu0 0.0
    %1139 = vmatpush.msra.mxu0 0.0
    %1140 = vmatpush.msra.mxu0 0.0
    %1141 = vmatpush.msra.mxu0 0.0
    %1142 = vmatpush.msra.mxu0 0.0
    %1143 = vmatpush.msra.mxu0 0.0
    %1144 = vmatpush.msra.mxu0 0.0
    %1145 = vmatpush.msra.mxu0 %v12
    %1146 = vmatmul.f32.gmra.mxu0 %v1086
    %v1147 = vpop.f32.mrf.mxu0
    %v1148 = vadd.f32 0.0, %v1147
    %1149 = vdwg.mxu0
    %1151 = vrot.lane.b32.xlu0 %v1129, 104
    %v1152 = vpop.permute.xlu0 %1151
    %v1153 = vsel %vm21, %v1152, 0
    %1155 = vmatpush.msra.mxu0 0.0
    %1156 = vmatpush.msra.mxu0 0.0
    %1157 = vmatpush.msra.mxu0 0.0
    %1158 = vmatpush.msra.mxu0 0.0
    %1159 = vmatpush.msra.mxu0 0.0
    %1160 = vmatpush.msra.mxu0 0.0
    %1161 = vmatpush.msra.mxu0 0.0
    %1162 = vmatpush.msra.mxu0 0.0
    %1163 = vmatpush.msra.mxu0 0.0
    %1164 = vmatpush.msra.mxu0 0.0
    %1165 = vmatpush.msra.mxu0 0.0
    %1166 = vmatpush.msra.mxu0 0.0
    %1167 = vmatpush.msra.mxu0 0.0
    %1168 = vmatpush.msra.mxu0 0.0
    %1169 = vmatpush.msra.mxu0 0.0
    %1170 = vmatpush.msra.mxu0 %v13
    %1171 = vmatmul.f32.gmra.mxu0 %v1153
    %v1172 = vpop.f32.mrf.mxu0
    %v1173 = vadd.f32 0.0, %v1172
    %1174 = vdwg.mxu0
    %v1176 = vrot.slane %v1148, 1
    %v1178 = vadd.f32 %v286, %v1176
    %v1179 = vmul.f32 %v290, %v1178
    %v1180 = vtanh.pop %v1179
    %v1181 = vmul.f32 %v290, %v1180
    %v1182 = vadd.f32 %v1181, %v291
    %v1184 = vrot.slane %v1075, 7
    %v1186 = vmul.f32 %v1182, %v1184
    %1188 = vrot.lane.b32.xlu0 %v1182, 112
    %v1189 = vpop.permute.xlu0 %1188
    %v1191 = vmul.f32 %v1182, %v1189
    %1193 = vrot.lane.b32.xlu0 %v1191, 8
    %v1194 = vpop.permute.xlu0 %1193
    %v1196 = vadd.f32 %v1186, %v1194
    %v1197 = vtanh.pop %v1196
    %1199 = vrot.lane.b32.xlu0 %v1197, 16
    %v1200 = vpop.permute.xlu0 %1199
    %v1202 = vmul.f32 %v1182, %v1200
    %v1204 = vrot.slane %v1202, 7
    %1205 = vrot.lane.b32.xlu0 %v1204, 104
    %v1206 = vpop.permute.xlu0 %1205
    %v1207 = vsel %vm21, %v1206, 0
    %1209 = vmatpush.msra.mxu0 0.0
    %1210 = vmatpush.msra.mxu0 0.0
    %1211 = vmatpush.msra.mxu0 0.0
    %1212 = vmatpush.msra.mxu0 0.0
    %1213 = vmatpush.msra.mxu0 0.0
    %1214 = vmatpush.msra.mxu0 0.0
    %1215 = vmatpush.msra.mxu0 0.0
    %1216 = vmatpush.msra.mxu0 0.0
    %1217 = vmatpush.msra.mxu0 0.0
    %1218 = vmatpush.msra.mxu0 0.0
    %1219 = vmatpush.msra.mxu0 0.0
    %1220 = vmatpush.msra.mxu0 0.0
    %1221 = vmatpush.msra.mxu0 0.0
    %1222 = vmatpush.msra.mxu0 0.0
    %1223 = vmatpush.msra.mxu0 0.0
    %1224 = vmatpush.msra.mxu0 %v14
    %1225 = vmatmul.f32.gmra.mxu0 %v1207
    %v1226 = vpop.f32.mrf.mxu0
    %v1227 = vadd.f32 %v1173, %v1226
    %1228 = vdwg.mxu0
    %v1229 = vadd.f32 %v1227, %v17
    %v1230 = vmul.f32 %v290, %v1229
    %v1231 = vtanh.pop %v1230
    %v1232 = vmul.f32 %v290, %v1231
    %v1233 = vadd.f32 %v1232, %v291
    %v1234 = vmul.f32 %v1233, %v1123
    %1236 = vrot.lane.b32.xlu0 %v1233, 112
    %v1237 = vpop.permute.xlu0 %1236
    %v1239 = vmul.f32 %v1233, %v1237
    %1241 = vrot.lane.b32.xlu0 %v1239, 8
    %v1242 = vpop.permute.xlu0 %1241
    %v1244 = vadd.f32 %v1234, %v1242
    %v1245 = vtanh.pop %v1244
    %1247 = vrot.lane.b32.xlu0 %v1245, 16
    %v1248 = vpop.permute.xlu0 %1247
    %v1250 = vmul.f32 %v1233, %v1248
    %1251 = vst.msk [vmem:[#allocation3] sm:$0xff] %vm25, %v20
    %v1252 = vperm.slane %v1250, 0
    %1254 = vrot.lane.b32.xlu0 %v1252, 108
    %v1255 = vpop.permute.xlu0 %1254
    %vm1257 = vcmask 97312
    %1258 = vst.msk [vmem:[#allocation3] sm:$0xff] %vm1257, %v1255
    // Predicated region
    $region10: #{tpu_custom_call.1} parent=1 // pred_check
      _
    $region11: #{tpu_custom_call.1} parent=1 // pred_check_branch
      %1260 = sbr.rel (0) target = $region13
    $region12: #{tpu_custom_call.1} parent=1 // pred_region
      %1262 = vsyncadd [#allocation4], 0
      %s1264 = sshll.u32 [#allocation3], 4
      %s1265 = int_to_ptr.vmem [resolvable:$true] %s1264
      %s1266 = sshll.u32 %s2, 4
      %s1267 = int_to_ptr.hbm [resolvable:$true] %s1266
      %1269 = dma.vmem_to_hbm [thread:$0]  %s1265, 128, %s1267, [#allocation4]
    $region13: #{tpu_custom_call.1} parent=1 // pred_fallthru
      _
    // Predicated region
    $region14: #{tpu_custom_call.1} parent=1 // pred_check
      _
    $region15: #{tpu_custom_call.1} parent=1 // pred_check_branch
      %1271 = sbr.rel (0) target = $region17
    $region16: #{tpu_custom_call.1} parent=1 // pred_region
      %1273 = dma.done [#allocation4], 128
    $region17: #{tpu_custom_call.1} parent=1 // pred_fallthru
      _
    %1274 = vsyncpa [#allocation4], 1

</llo_original>
